<compile_context>
chip_gen: v7x
topology: tpu7x:2x2x1
jax: 0.10.0
libtpu: 0.0.40
codegen_flags: <defaults>
</compile_context>

<pallas_src>
import functools

import jax
import jax.numpy as jnp
from jax import lax
from jax.experimental import pallas as pl
from jax.experimental.pallas import tpu as pltpu

EPS = 1e-3            # matches nn.BatchNorm2d(eps=0.001) in the spec module
LEAKY_SLOPE = 0.1


def _vmem_limit_bytes():
    """Generation-aware VMEM budget (v5e/v6e: 128 MiB, v7x: 64 MiB physical)."""
    cap = 64 * 1024 * 1024                      # conservative default (v7x)
    get_info = getattr(pltpu, "get_tpu_info", None)
    if get_info is not None:
        try:
            cap = int(getattr(get_info(), "vmem_capacity_bytes", cap))
        except Exception:
            pass
    return int(min(cap // 2, 96 * 1024 * 1024))


# ----------------------------------------------------------------------------
# Kernel 1: down-sample DBL  (3x3 conv, stride 2, pad 1) + BN + LeakyReLU
# ----------------------------------------------------------------------------
def _down_kernel(x0_ref, x1_ref, x2_ref, w_ref, b_ref, o_ref, *, ho, wo):
    """One image per grid step.

    x{dx}_ref : (H+2, Wo, Cin)  column-phase-dx view of the halo-padded input
    w_ref     : (9, Cin, Cout)  BN-scale-folded weight taps (tap = dy*3+dx)
    b_ref     : (1, Cout)       folded bias (f32)
    o_ref     : (Ho, Wo, Cout)
    """
    cout = o_ref.shape[-1]
    taps = (x0_ref, x1_ref, x2_ref)

    def row_body(r, carry):
        # accumulator initialised with the bias (saves an epilogue add)
        acc = jnp.broadcast_to(b_ref[...], (wo, cout))
        for dy in range(3):
            for dx in range(3):
                win = taps[dx][2 * r + dy]                      # (Wo, Cin)
                acc = acc + jnp.dot(win, w_ref[dy * 3 + dx],
                                    preferred_element_type=jnp.float32)
        y = jnp.maximum(acc, LEAKY_SLOPE * acc)                 # LeakyReLU(0.1)
        o_ref[r] = y.astype(o_ref.dtype)
        return carry

    lax.fori_loop(0, ho, row_body, 0)


# ----------------------------------------------------------------------------
# Kernel 2: fused _ResUnit  (1x1 DBL -> 3x3 DBL -> residual add)
# ----------------------------------------------------------------------------
def _resunit_kernel(x_ref, w1_ref, b1_ref, w2_ref, b2_ref, o_ref, tmp_ref,
                    *, hh, ww):
    """One image per grid step; intermediate never leaves VMEM.

    x_ref  : (H, W, C)        input activation (also the residual)
    w1_ref : (C, Cmid)        folded 1x1 weights
    b1_ref : (1, Cmid)        folded 1x1 bias (f32)
    w2_ref : (9, Cmid, C)     folded 3x3 weight taps
    b2_ref : (1, C)           folded 3x3 bias (f32)
    o_ref  : (H, W, C)
    tmp_ref: (H+2, W+2, Cmid) f32 VMEM scratch (zero halo ring)
    """
    c = o_ref.shape[-1]

    # zero halo ring (interior is overwritten by the 1x1 conv below)
    tmp_ref[...] = jnp.zeros_like(tmp_ref)

    def conv1_row(h, carry):                                    # 1x1 DBL
        y = jnp.dot(x_ref[h], w1_ref[...],
                    preferred_element_type=jnp.float32)         # (W, Cmid)
        y = y + b1_ref[...]
        y = jnp.maximum(y, LEAKY_SLOPE * y)
        tmp_ref[h + 1, pl.ds(1, ww), :] = y                     # into the halo frame
        return carry

    lax.fori_loop(0, hh, conv1_row, 0)

    def conv2_row(h, carry):                                    # 3x3 DBL + residual
        acc = jnp.broadcast_to(b2_ref[...], (ww, c))
        for dy in range(3):
            for dx in range(3):
                win = tmp_ref[h + dy, pl.ds(dx, ww), :].astype(w2_ref.dtype)
                acc = acc + jnp.dot(win, w2_ref[dy * 3 + dx],
                                    preferred_element_type=jnp.float32)
        y = jnp.maximum(acc, LEAKY_SLOPE * acc)
        res = x_ref[h].astype(jnp.float32)
        o_ref[h] = (res + y).astype(o_ref.dtype)
        return carry

    lax.fori_loop(0, hh, conv2_row, 0)


# ----------------------------------------------------------------------------
# Plain-JAX glue: BN folding, wrappers, parameter init
# ----------------------------------------------------------------------------
def fold_dbl_params(p):
    """Fold conv bias + BatchNorm(eval) into per-tap weights and a bias.
    Weight (Cout, Cin, kh, kw) -> (kh*kw, Cin, Cout), tap index = dy*kw + dx,
    scaled by gamma / sqrt(var + eps)."""
    w, b, gamma, beta, mean, var = (p["w"], p["b"], p["gamma"], p["beta"],
                                    p["mean"], p["var"])
    cout, cin, kh, kw = w.shape
    scale = gamma / jnp.sqrt(var + EPS)
    bias = (b - mean) * scale + beta
    w_taps = jnp.transpose(w, (2, 3, 1, 0)).reshape(kh * kw, cin, cout)
    return w_taps * scale[None, None, :], bias


def down_forward(x_nhwc, params, compute_dtype):
    """3x3 / stride-2 / pad-1 DBL."""
    n, h, w, c = x_nhwc.shape
    ho, wo = (h - 1) // 2 + 1, (w - 1) // 2 + 1
    w_taps, bias = fold_dbl_params(params)                 # (9, Cin, Cout), (Cout,)
    cout = w_taps.shape[-1]
    wt = w_taps.astype(compute_dtype)
    bb = bias.reshape(1, cout).astype(jnp.float32)

    # Halo-pad once; the 3 column-phase views make the stride-2 taps contiguous
    # in-kernel loads.  ~1.5x this (small, first-layer) input in HBM.
    xp = jnp.pad(x_nhwc.astype(compute_dtype), ((0, 0), (1, 1), (1, 1), (0, 0)))
    views = [xp[:, :, dx:dx + 2 * wo - 1:2, :] for dx in range(3)]

    isz = jnp.dtype(compute_dtype).itemsize
    cost = pl.CostEstimate(
        flops=2 * n * ho * wo * 9 * c * cout,
        transcendentals=0,
        bytes_accessed=3 * n * (h + 2) * wo * c * isz
        + n * ho * wo * cout * isz + 9 * c * cout * isz + 4 * cout)

    return pl.pallas_call(
        functools.partial(_down_kernel, ho=ho, wo=wo),
        out_shape=jax.ShapeDtypeStruct((n, ho, wo, cout), compute_dtype),
        grid=(n,),
        in_specs=[
            pl.BlockSpec((None, h + 2, wo, c), lambda i: (i, 0, 0, 0)),
            pl.BlockSpec((None, h + 2, wo, c), lambda i: (i, 0, 0, 0)),
            pl.BlockSpec((None, h + 2, wo, c), lambda i: (i, 0, 0, 0)),
            pl.BlockSpec((9, c, cout), lambda i: (0, 0, 0)),   # weights: resident
            pl.BlockSpec((1, cout), lambda i: (0, 0)),
        ],
        out_specs=pl.BlockSpec((None, ho, wo, cout), lambda i: (i, 0, 0, 0)),
        compiler_params=pltpu.CompilerParams(
            dimension_semantics=("parallel",),
            vmem_limit_bytes=_vmem_limit_bytes()),
        cost_estimate=cost,
    )(*views, wt, bb)


def resunit_forward(x_nhwc, blk, compute_dtype):
    """Fused _ResUnit: dbl1 (1x1) -> dbl2 (3x3, pad 1) -> + x."""
    n, h, w, c = x_nhwc.shape
    w1_taps, b1 = fold_dbl_params(blk["dbl1"])             # (1, C, Cmid)
    w2_taps, b2 = fold_dbl_params(blk["dbl2"])             # (9, Cmid, C)
    cmid = w1_taps.shape[-1]
    w1m = w1_taps[0].astype(compute_dtype)                 # (C, Cmid)
    w2m = w2_taps.astype(compute_dtype)                    # (9, Cmid, C)
    b1m = b1.reshape(1, cmid).astype(jnp.float32)
    b2m = b2.reshape(1, c).astype(jnp.float32)
    x_in = x_nhwc.astype(compute_dtype)

    isz = jnp.dtype(compute_dtype).itemsize
    cost = pl.CostEstimate(
        flops=2 * n * h * w * (c * cmid + 9 * cmid * c),
        transcendentals=0,
        bytes_accessed=2 * n * h * w * c * isz
        + (c * cmid + 9 * cmid * c) * isz + 4 * (c + cmid))

    return pl.pallas_call(
        functools.partial(_resunit_kernel, hh=h, ww=w),
        out_shape=jax.ShapeDtypeStruct((n, h, w, c), compute_dtype),
        grid=(n,),
        in_specs=[
            pl.BlockSpec((None, h, w, c), lambda i: (i, 0, 0, 0)),
            pl.BlockSpec((c, cmid), lambda i: (0, 0)),
            pl.BlockSpec((1, cmid), lambda i: (0, 0)),
            pl.BlockSpec((9, cmid, c), lambda i: (0, 0, 0)),
            pl.BlockSpec((1, c), lambda i: (0, 0)),
        ],
        out_specs=pl.BlockSpec((None, h, w, c), lambda i: (i, 0, 0, 0)),
        scratch_shapes=[pltpu.VMEM((h + 2, w + 2, cmid), jnp.float32)],
        compiler_params=pltpu.CompilerParams(
            dimension_semantics=("parallel",),
            vmem_limit_bytes=_vmem_limit_bytes()),
        cost_estimate=cost,
    )(x_in, w1m, b1m, w2m, b2m)


def init_dbl(key, cin, cout, k):
    ks = jax.random.split(key, 6)
    return {
        "w": 0.1 * jax.random.normal(ks[0], (cout, cin, k, k), jnp.float32),
        "b": 0.05 * jax.random.normal(ks[1], (cout,), jnp.float32),
        "gamma": 1.0 + 0.1 * jax.random.normal(ks[2], (cout,), jnp.float32),
        "beta": 0.05 * jax.random.normal(ks[3], (cout,), jnp.float32),
        "mean": 0.05 * jax.random.normal(ks[4], (cout,), jnp.float32),
        "var": 1.0 + 0.2 * jax.random.uniform(ks[5], (cout,), jnp.float32),
    }


def init_resblock(key, input_channels, block_number):
    c2 = input_channels * 2
    keys = jax.random.split(key, 1 + 2 * block_number)
    params = {"down": init_dbl(keys[0], input_channels, c2, 3), "blocks": []}
    for i in range(block_number):
        params["blocks"].append({
            "dbl1": init_dbl(keys[1 + 2 * i], c2, c2 // 2, 1),
            "dbl2": init_dbl(keys[2 + 2 * i], c2 // 2, c2, 3),
        })
    return params


@functools.partial(jax.jit, static_argnames=("compute_dtype",))
def resblock_forward(x_nchw, params, compute_dtype=jnp.bfloat16):
    """Matches _ResBlock.forward. Input NCHW (PyTorch layout), output NCHW f32.
    Activations stay in `compute_dtype` (bf16 fast path) between layers."""
    x = jnp.transpose(x_nchw, (0, 2, 3, 1))                      # -> NHWC
    x = down_forward(x, params["down"], compute_dtype)
    for blk in params["blocks"]:
        x = resunit_forward(x, blk, compute_dtype)
    return jnp.transpose(x, (0, 3, 1, 2)).astype(jnp.float32)    # -> NCHW


# ----------------------------------------------------------------------------
# Pure-JAX reference (lax.conv, f32) for correctness check
# ----------------------------------------------------------------------------
def _dbl_ref(x_nhwc, p, stride, pad):
    w = jnp.transpose(p["w"], (2, 3, 1, 0))  # HWIO
    y = lax.conv_general_dilated(
        x_nhwc, w, window_strides=(stride, stride),
        padding=((pad, pad), (pad, pad)),
        dimension_numbers=("NHWC", "HWIO", "NHWC"))
    y = y + p["b"]
    y = (y - p["mean"]) / jnp.sqrt(p["var"] + EPS) * p["gamma"] + p["beta"]
    return jnp.where(y >= 0, y, LEAKY_SLOPE * y)


def _resblock_ref(x_nchw, params):
    x = jnp.transpose(x_nchw, (0, 2, 3, 1)).astype(jnp.float32)
    x = _dbl_ref(x, params["down"], 2, 1)
    for blk in params["blocks"]:
        tmp = _dbl_ref(x, blk["dbl1"], 1, 0)
        x = x + _dbl_ref(tmp, blk["dbl2"], 1, 1)
    return jnp.transpose(x, (0, 3, 1, 2))


if __name__ == "__main__":
    key = jax.random.PRNGKey(0)
    k_x, k_p = jax.random.split(key)

    N, C, H, W = 2, 4, 16, 16
    block_number = 2
    x = jax.random.normal(k_x, (N, C, H, W), jnp.float32)
    params = init_resblock(k_p, C, block_number)

    # Performance path: bf16 MXU operands + bf16 inter-layer activations,
    # f32 accumulation / epilogue.
    out_bf16 = jax.block_until_ready(
        resblock_forward(x, params, compute_dtype=jnp.bfloat16))
    assert out_bf16.shape == (N, 2 * C, H // 2, W // 2), out_bf16.shape

    ref = jax.block_until_ready(_resblock_ref(x, params))

    # Tight check on the pure-f32 compute path (same kernels, f32 everywhere).
    out_f32 = jax.block_until_ready(
        resblock_forward(x, params, compute_dtype=jnp.float32))
    if not jnp.allclose(out_f32, ref, atol=2e-3, rtol=2e-3):
        err = float(jnp.max(jnp.abs(out_f32 - ref)))
        raise AssertionError(f"f32 Pallas path mismatch, max abs err={err}")

    # Looser check on the bf16 fast path (bf16 storage rounding between layers).
    if not jnp.allclose(out_bf16, ref, atol=5e-2, rtol=5e-2):
        err = float(jnp.max(jnp.abs(out_bf16 - ref)))
        raise AssertionError(f"bf16 Pallas path mismatch, max abs err={err}")

    print("KERNEL_OK")
</pallas_src>

<mosaic_0001>
module attributes {stable_mosaic.version = 11 : i64} {
  func.func @_down_kernel(%arg0: i32, %arg1: memref<1x18x8x4xbf16, #tpu.memory_space<vmem>>, %arg2: memref<1x18x8x4xbf16, #tpu.memory_space<vmem>>, %arg3: memref<1x18x8x4xbf16, #tpu.memory_space<vmem>>, %arg4: memref<9x4x8xbf16, #tpu.memory_space<vmem>>, %arg5: memref<1x8xf32, #tpu.memory_space<vmem>>, %arg6: memref<1x8x8x8xbf16, #tpu.memory_space<vmem>>) attributes {dimension_semantics = [#tpu.dimension_semantics<parallel>], iteration_bounds = array<i64: 2>, scalar_prefetch = 0 : i64, scratch_operands = 0 : i64, tpu.core_type = #tpu.core_type<tc>, window_params = [{transform_indices = @transform_0, window_bounds = array<i64: 1, 18, 8, 4>}, {transform_indices = @transform_1, window_bounds = array<i64: 1, 18, 8, 4>}, {transform_indices = @transform_2, window_bounds = array<i64: 1, 18, 8, 4>}, {pipeline_mode = #tpu.pipeline_mode<synchronous>, transform_indices = @transform_3, window_bounds = array<i64: 9, 4, 8>}, {pipeline_mode = #tpu.pipeline_mode<synchronous>, transform_indices = @transform_4, window_bounds = array<i64: 1, 8>}, {transform_indices = @transform_5, window_bounds = array<i64: 1, 8, 8, 8>}]} {
    %c0_i32 = arith.constant 0 : i32
    %c8_i32 = arith.constant 8 : i32
    %0 = arith.addi %c0_i32, %c8_i32 : i32
    %c1_i32 = arith.constant 1 : i32
    scf.for %arg7 = %c0_i32 to %0 step %c1_i32  : i32 {
      %c0 = arith.constant 0 : index
      %c0_1 = arith.constant 0 : index
      %1 = vector.load %arg5[%c0, %c0_1] : memref<1x8xf32, #tpu.memory_space<vmem>>, vector<1x8xf32>
      %2 = vector.shape_cast %1 : vector<1x8xf32> to vector<1x8xf32>
      %3 = vector.broadcast %2 : vector<1x8xf32> to vector<8x8xf32>
      %c2_i32 = arith.constant 2 : i32
      %4 = arith.muli %c2_i32, %arg7 : i32
      %c0_i32_2 = arith.constant 0 : i32
      %5 = arith.addi %4, %c0_i32_2 : i32
      %c0_3 = arith.constant 0 : index
      %6 = arith.index_cast %5 : i32 to index
      %c0_4 = arith.constant 0 : index
      %c0_5 = arith.constant 0 : index
      %7 = vector.load %arg1[%c0_3, %6, %c0_4, %c0_5] : memref<1x18x8x4xbf16, #tpu.memory_space<vmem>>, vector<1x1x8x4xbf16>
      %8 = vector.shape_cast %7 : vector<1x1x8x4xbf16> to vector<8x4xbf16>
      %c0_6 = arith.constant 0 : index
      %c0_7 = arith.constant 0 : index
      %c0_8 = arith.constant 0 : index
      %9 = vector.load %arg4[%c0_6, %c0_7, %c0_8] : memref<9x4x8xbf16, #tpu.memory_space<vmem>>, vector<1x4x8xbf16>
      %10 = vector.shape_cast %9 : vector<1x4x8xbf16> to vector<4x8xbf16>
      %cst = arith.constant dense<0.000000e+00> : vector<8x8xf32>
      %11 = tpu.matmul %8, %10, %cst {dimension_numbers = #tpu.dot_dimension_numbers<[1], [0], [0], [1], [0, 0, 1, 1], [], []>} : vector<8x4xbf16>, vector<4x8xbf16>, vector<8x8xf32> -> vector<8x8xf32>
      %12 = arith.addf %3, %11 : vector<8x8xf32>
      %c2_i32_9 = arith.constant 2 : i32
      %13 = arith.muli %c2_i32_9, %arg7 : i32
      %c0_i32_10 = arith.constant 0 : i32
      %14 = arith.addi %13, %c0_i32_10 : i32
      %c0_11 = arith.constant 0 : index
      %15 = arith.index_cast %14 : i32 to index
      %c0_12 = arith.constant 0 : index
      %c0_13 = arith.constant 0 : index
      %16 = vector.load %arg2[%c0_11, %15, %c0_12, %c0_13] : memref<1x18x8x4xbf16, #tpu.memory_space<vmem>>, vector<1x1x8x4xbf16>
      %17 = vector.shape_cast %16 : vector<1x1x8x4xbf16> to vector<8x4xbf16>
      %c1 = arith.constant 1 : index
      %c0_14 = arith.constant 0 : index
      %c0_15 = arith.constant 0 : index
      %18 = vector.load %arg4[%c1, %c0_14, %c0_15] : memref<9x4x8xbf16, #tpu.memory_space<vmem>>, vector<1x4x8xbf16>
      %19 = vector.shape_cast %18 : vector<1x4x8xbf16> to vector<4x8xbf16>
      %cst_16 = arith.constant dense<0.000000e+00> : vector<8x8xf32>
      %20 = tpu.matmul %17, %19, %cst_16 {dimension_numbers = #tpu.dot_dimension_numbers<[1], [0], [0], [1], [0, 0, 1, 1], [], []>} : vector<8x4xbf16>, vector<4x8xbf16>, vector<8x8xf32> -> vector<8x8xf32>
      %21 = arith.addf %12, %20 : vector<8x8xf32>
      %c2_i32_17 = arith.constant 2 : i32
      %22 = arith.muli %c2_i32_17, %arg7 : i32
      %c0_i32_18 = arith.constant 0 : i32
      %23 = arith.addi %22, %c0_i32_18 : i32
      %c0_19 = arith.constant 0 : index
      %24 = arith.index_cast %23 : i32 to index
      %c0_20 = arith.constant 0 : index
      %c0_21 = arith.constant 0 : index
      %25 = vector.load %arg3[%c0_19, %24, %c0_20, %c0_21] : memref<1x18x8x4xbf16, #tpu.memory_space<vmem>>, vector<1x1x8x4xbf16>
      %26 = vector.shape_cast %25 : vector<1x1x8x4xbf16> to vector<8x4xbf16>
      %c2 = arith.constant 2 : index
      %c0_22 = arith.constant 0 : index
      %c0_23 = arith.constant 0 : index
      %27 = vector.load %arg4[%c2, %c0_22, %c0_23] : memref<9x4x8xbf16, #tpu.memory_space<vmem>>, vector<1x4x8xbf16>
      %28 = vector.shape_cast %27 : vector<1x4x8xbf16> to vector<4x8xbf16>
      %cst_24 = arith.constant dense<0.000000e+00> : vector<8x8xf32>
      %29 = tpu.matmul %26, %28, %cst_24 {dimension_numbers = #tpu.dot_dimension_numbers<[1], [0], [0], [1], [0, 0, 1, 1], [], []>} : vector<8x4xbf16>, vector<4x8xbf16>, vector<8x8xf32> -> vector<8x8xf32>
      %30 = arith.addf %21, %29 : vector<8x8xf32>
      %c2_i32_25 = arith.constant 2 : i32
      %31 = arith.muli %c2_i32_25, %arg7 : i32
      %c1_i32_26 = arith.constant 1 : i32
      %32 = arith.addi %31, %c1_i32_26 : i32
      %c0_27 = arith.constant 0 : index
      %33 = arith.index_cast %32 : i32 to index
      %c0_28 = arith.constant 0 : index
      %c0_29 = arith.constant 0 : index
      %34 = vector.load %arg1[%c0_27, %33, %c0_28, %c0_29] : memref<1x18x8x4xbf16, #tpu.memory_space<vmem>>, vector<1x1x8x4xbf16>
      %35 = vector.shape_cast %34 : vector<1x1x8x4xbf16> to vector<8x4xbf16>
      %c3 = arith.constant 3 : index
      %c0_30 = arith.constant 0 : index
      %c0_31 = arith.constant 0 : index
      %36 = vector.load %arg4[%c3, %c0_30, %c0_31] : memref<9x4x8xbf16, #tpu.memory_space<vmem>>, vector<1x4x8xbf16>
      %37 = vector.shape_cast %36 : vector<1x4x8xbf16> to vector<4x8xbf16>
      %cst_32 = arith.constant dense<0.000000e+00> : vector<8x8xf32>
      %38 = tpu.matmul %35, %37, %cst_32 {dimension_numbers = #tpu.dot_dimension_numbers<[1], [0], [0], [1], [0, 0, 1, 1], [], []>} : vector<8x4xbf16>, vector<4x8xbf16>, vector<8x8xf32> -> vector<8x8xf32>
      %39 = arith.addf %30, %38 : vector<8x8xf32>
      %c2_i32_33 = arith.constant 2 : i32
      %40 = arith.muli %c2_i32_33, %arg7 : i32
      %c1_i32_34 = arith.constant 1 : i32
      %41 = arith.addi %40, %c1_i32_34 : i32
      %c0_35 = arith.constant 0 : index
      %42 = arith.index_cast %41 : i32 to index
      %c0_36 = arith.constant 0 : index
      %c0_37 = arith.constant 0 : index
      %43 = vector.load %arg2[%c0_35, %42, %c0_36, %c0_37] : memref<1x18x8x4xbf16, #tpu.memory_space<vmem>>, vector<1x1x8x4xbf16>
      %44 = vector.shape_cast %43 : vector<1x1x8x4xbf16> to vector<8x4xbf16>
      %c4 = arith.constant 4 : index
      %c0_38 = arith.constant 0 : index
      %c0_39 = arith.constant 0 : index
      %45 = vector.load %arg4[%c4, %c0_38, %c0_39] : memref<9x4x8xbf16, #tpu.memory_space<vmem>>, vector<1x4x8xbf16>
      %46 = vector.shape_cast %45 : vector<1x4x8xbf16> to vector<4x8xbf16>
      %cst_40 = arith.constant dense<0.000000e+00> : vector<8x8xf32>
      %47 = tpu.matmul %44, %46, %cst_40 {dimension_numbers = #tpu.dot_dimension_numbers<[1], [0], [0], [1], [0, 0, 1, 1], [], []>} : vector<8x4xbf16>, vector<4x8xbf16>, vector<8x8xf32> -> vector<8x8xf32>
      %48 = arith.addf %39, %47 : vector<8x8xf32>
      %c2_i32_41 = arith.constant 2 : i32
      %49 = arith.muli %c2_i32_41, %arg7 : i32
      %c1_i32_42 = arith.constant 1 : i32
      %50 = arith.addi %49, %c1_i32_42 : i32
      %c0_43 = arith.constant 0 : index
      %51 = arith.index_cast %50 : i32 to index
      %c0_44 = arith.constant 0 : index
      %c0_45 = arith.constant 0 : index
      %52 = vector.load %arg3[%c0_43, %51, %c0_44, %c0_45] : memref<1x18x8x4xbf16, #tpu.memory_space<vmem>>, vector<1x1x8x4xbf16>
      %53 = vector.shape_cast %52 : vector<1x1x8x4xbf16> to vector<8x4xbf16>
      %c5 = arith.constant 5 : index
      %c0_46 = arith.constant 0 : index
      %c0_47 = arith.constant 0 : index
      %54 = vector.load %arg4[%c5, %c0_46, %c0_47] : memref<9x4x8xbf16, #tpu.memory_space<vmem>>, vector<1x4x8xbf16>
      %55 = vector.shape_cast %54 : vector<1x4x8xbf16> to vector<4x8xbf16>
      %cst_48 = arith.constant dense<0.000000e+00> : vector<8x8xf32>
      %56 = tpu.matmul %53, %55, %cst_48 {dimension_numbers = #tpu.dot_dimension_numbers<[1], [0], [0], [1], [0, 0, 1, 1], [], []>} : vector<8x4xbf16>, vector<4x8xbf16>, vector<8x8xf32> -> vector<8x8xf32>
      %57 = arith.addf %48, %56 : vector<8x8xf32>
      %c2_i32_49 = arith.constant 2 : i32
      %58 = arith.muli %c2_i32_49, %arg7 : i32
      %c2_i32_50 = arith.constant 2 : i32
      %59 = arith.addi %58, %c2_i32_50 : i32
      %c0_51 = arith.constant 0 : index
      %60 = arith.index_cast %59 : i32 to index
      %c0_52 = arith.constant 0 : index
      %c0_53 = arith.constant 0 : index
      %61 = vector.load %arg1[%c0_51, %60, %c0_52, %c0_53] : memref<1x18x8x4xbf16, #tpu.memory_space<vmem>>, vector<1x1x8x4xbf16>
      %62 = vector.shape_cast %61 : vector<1x1x8x4xbf16> to vector<8x4xbf16>
      %c6 = arith.constant 6 : index
      %c0_54 = arith.constant 0 : index
      %c0_55 = arith.constant 0 : index
      %63 = vector.load %arg4[%c6, %c0_54, %c0_55] : memref<9x4x8xbf16, #tpu.memory_space<vmem>>, vector<1x4x8xbf16>
      %64 = vector.shape_cast %63 : vector<1x4x8xbf16> to vector<4x8xbf16>
      %cst_56 = arith.constant dense<0.000000e+00> : vector<8x8xf32>
      %65 = tpu.matmul %62, %64, %cst_56 {dimension_numbers = #tpu.dot_dimension_numbers<[1], [0], [0], [1], [0, 0, 1, 1], [], []>} : vector<8x4xbf16>, vector<4x8xbf16>, vector<8x8xf32> -> vector<8x8xf32>
      %66 = arith.addf %57, %65 : vector<8x8xf32>
      %c2_i32_57 = arith.constant 2 : i32
      %67 = arith.muli %c2_i32_57, %arg7 : i32
      %c2_i32_58 = arith.constant 2 : i32
      %68 = arith.addi %67, %c2_i32_58 : i32
      %c0_59 = arith.constant 0 : index
      %69 = arith.index_cast %68 : i32 to index
      %c0_60 = arith.constant 0 : index
      %c0_61 = arith.constant 0 : index
      %70 = vector.load %arg2[%c0_59, %69, %c0_60, %c0_61] : memref<1x18x8x4xbf16, #tpu.memory_space<vmem>>, vector<1x1x8x4xbf16>
      %71 = vector.shape_cast %70 : vector<1x1x8x4xbf16> to vector<8x4xbf16>
      %c7 = arith.constant 7 : index
      %c0_62 = arith.constant 0 : index
      %c0_63 = arith.constant 0 : index
      %72 = vector.load %arg4[%c7, %c0_62, %c0_63] : memref<9x4x8xbf16, #tpu.memory_space<vmem>>, vector<1x4x8xbf16>
      %73 = vector.shape_cast %72 : vector<1x4x8xbf16> to vector<4x8xbf16>
      %cst_64 = arith.constant dense<0.000000e+00> : vector<8x8xf32>
      %74 = tpu.matmul %71, %73, %cst_64 {dimension_numbers = #tpu.dot_dimension_numbers<[1], [0], [0], [1], [0, 0, 1, 1], [], []>} : vector<8x4xbf16>, vector<4x8xbf16>, vector<8x8xf32> -> vector<8x8xf32>
      %75 = arith.addf %66, %74 : vector<8x8xf32>
      %c2_i32_65 = arith.constant 2 : i32
      %76 = arith.muli %c2_i32_65, %arg7 : i32
      %c2_i32_66 = arith.constant 2 : i32
      %77 = arith.addi %76, %c2_i32_66 : i32
      %c0_67 = arith.constant 0 : index
      %78 = arith.index_cast %77 : i32 to index
      %c0_68 = arith.constant 0 : index
      %c0_69 = arith.constant 0 : index
      %79 = vector.load %arg3[%c0_67, %78, %c0_68, %c0_69] : memref<1x18x8x4xbf16, #tpu.memory_space<vmem>>, vector<1x1x8x4xbf16>
      %80 = vector.shape_cast %79 : vector<1x1x8x4xbf16> to vector<8x4xbf16>
      %c8 = arith.constant 8 : index
      %c0_70 = arith.constant 0 : index
      %c0_71 = arith.constant 0 : index
      %81 = vector.load %arg4[%c8, %c0_70, %c0_71] : memref<9x4x8xbf16, #tpu.memory_space<vmem>>, vector<1x4x8xbf16>
      %82 = vector.shape_cast %81 : vector<1x4x8xbf16> to vector<4x8xbf16>
      %cst_72 = arith.constant dense<0.000000e+00> : vector<8x8xf32>
      %83 = tpu.matmul %80, %82, %cst_72 {dimension_numbers = #tpu.dot_dimension_numbers<[1], [0], [0], [1], [0, 0, 1, 1], [], []>} : vector<8x4xbf16>, vector<4x8xbf16>, vector<8x8xf32> -> vector<8x8xf32>
      %84 = arith.addf %75, %83 : vector<8x8xf32>
      %cst_73 = arith.constant 1.000000e-01 : f32
      %85 = vector.broadcast %cst_73 : f32 to vector<8x8xf32>
      %86 = arith.mulf %85, %84 : vector<8x8xf32>
      %87 = arith.maximumf %84, %86 : vector<8x8xf32>
      %88 = arith.truncf %87 : vector<8x8xf32> to vector<8x8xbf16>
      %c0_74 = arith.constant 0 : index
      %89 = arith.index_cast %arg7 : i32 to index
      %c0_75 = arith.constant 0 : index
      %c0_76 = arith.constant 0 : index
      %90 = vector.load %arg6[%c0_74, %89, %c0_75, %c0_76] : memref<1x8x8x8xbf16, #tpu.memory_space<vmem>>, vector<1x1x8x8xbf16>
      %91 = vector.shape_cast %90 : vector<1x1x8x8xbf16> to vector<8x8xbf16>
      %92 = vector.shape_cast %88 : vector<8x8xbf16> to vector<1x1x8x8xbf16>
      tpu.vector_store %arg6[%c0_74, %89, %c0_75, %c0_76], %92 {strides = array<i32>} : memref<1x8x8x8xbf16, #tpu.memory_space<vmem>>, vector<1x1x8x8xbf16>,
    }
    %c8_i32_0 = arith.constant 8 : i32
    return
  }
  func.func @transform_0(%arg0: i32) -> (i32, i32, i32, i32) {
    %c0_i32 = arith.constant 0 : i32
    %c0_i32_0 = arith.constant 0 : i32
    %c0_i32_1 = arith.constant 0 : i32
    %c0_i32_2 = arith.constant 0 : i32
    return %arg0, %c0_i32, %c0_i32_0, %c0_i32_1 : i32, i32, i32, i32
  }
  func.func @transform_1(%arg0: i32) -> (i32, i32, i32, i32) {
    %c0_i32 = arith.constant 0 : i32
    %c0_i32_0 = arith.constant 0 : i32
    %c0_i32_1 = arith.constant 0 : i32
    %c0_i32_2 = arith.constant 0 : i32
    return %arg0, %c0_i32, %c0_i32_0, %c0_i32_1 : i32, i32, i32, i32
  }
  func.func @transform_2(%arg0: i32) -> (i32, i32, i32, i32) {
    %c0_i32 = arith.constant 0 : i32
    %c0_i32_0 = arith.constant 0 : i32
    %c0_i32_1 = arith.constant 0 : i32
    %c0_i32_2 = arith.constant 0 : i32
    return %arg0, %c0_i32, %c0_i32_0, %c0_i32_1 : i32, i32, i32, i32
  }
  func.func @transform_3(%arg0: i32) -> (i32, i32, i32) {
    %c0_i32 = arith.constant 0 : i32
    %c0_i32_0 = arith.constant 0 : i32
    %c0_i32_1 = arith.constant 0 : i32
    %c0_i32_2 = arith.constant 0 : i32
    return %c0_i32, %c0_i32_0, %c0_i32_1 : i32, i32, i32
  }
  func.func @transform_4(%arg0: i32) -> (i32, i32) {
    %c0_i32 = arith.constant 0 : i32
    %c0_i32_0 = arith.constant 0 : i32
    %c0_i32_1 = arith.constant 0 : i32
    return %c0_i32, %c0_i32_0 : i32, i32
  }
  func.func @transform_5(%arg0: i32) -> (i32, i32, i32, i32) {
    %c0_i32 = arith.constant 0 : i32
    %c0_i32_0 = arith.constant 0 : i32
    %c0_i32_1 = arith.constant 0 : i32
    %c0_i32_2 = arith.constant 0 : i32
    return %arg0, %c0_i32, %c0_i32_0, %c0_i32_1 : i32, i32, i32, i32
  }
}

module attributes {stable_mosaic.version = 11 : i64} {
  func.func @_resunit_kernel(%arg0: i32, %arg1: memref<1x8x8x8xbf16, #tpu.memory_space<vmem>>, %arg2: memref<8x4xbf16, #tpu.memory_space<vmem>>, %arg3: memref<1x4xf32, #tpu.memory_space<vmem>>, %arg4: memref<9x4x8xbf16, #tpu.memory_space<vmem>>, %arg5: memref<1x8xf32, #tpu.memory_space<vmem>>, %arg6: memref<1x8x8x8xbf16, #tpu.memory_space<vmem>>, %arg7: memref<10x10x4xf32, #tpu.memory_space<vmem>>) attributes {dimension_semantics = [#tpu.dimension_semantics<parallel>], iteration_bounds = array<i64: 2>, scalar_prefetch = 0 : i64, scratch_operands = 1 : i64, tpu.core_type = #tpu.core_type<tc>, window_params = [{transform_indices = @transform_0, window_bounds = array<i64: 1, 8, 8, 8>}, {pipeline_mode = #tpu.pipeline_mode<synchronous>, transform_indices = @transform_1, window_bounds = array<i64: 8, 4>}, {pipeline_mode = #tpu.pipeline_mode<synchronous>, transform_indices = @transform_2, window_bounds = array<i64: 1, 4>}, {pipeline_mode = #tpu.pipeline_mode<synchronous>, transform_indices = @transform_3, window_bounds = array<i64: 9, 4, 8>}, {pipeline_mode = #tpu.pipeline_mode<synchronous>, transform_indices = @transform_4, window_bounds = array<i64: 1, 8>}, {transform_indices = @transform_5, window_bounds = array<i64: 1, 8, 8, 8>}]} {
    %cst = arith.constant 0.000000e+00 : f32
    %0 = vector.broadcast %cst : f32 to vector<10x10x4xf32>
    %c0 = arith.constant 0 : index
    %c0_0 = arith.constant 0 : index
    %c0_1 = arith.constant 0 : index
    %1 = vector.load %arg7[%c0, %c0_0, %c0_1] : memref<10x10x4xf32, #tpu.memory_space<vmem>>, vector<10x10x4xf32>
    tpu.vector_store %arg7[%c0, %c0_0, %c0_1], %0 {strides = array<i32>} : memref<10x10x4xf32, #tpu.memory_space<vmem>>, vector<10x10x4xf32>,
    %c0_i32 = arith.constant 0 : i32
    %c8_i32 = arith.constant 8 : i32
    %2 = arith.addi %c0_i32, %c8_i32 : i32
    %c1_i32 = arith.constant 1 : i32
    scf.for %arg8 = %c0_i32 to %2 step %c1_i32  : i32 {
      %c0_7 = arith.constant 0 : index
      %4 = arith.index_cast %arg8 : i32 to index
      %c0_8 = arith.constant 0 : index
      %c0_9 = arith.constant 0 : index
      %5 = vector.load %arg1[%c0_7, %4, %c0_8, %c0_9] : memref<1x8x8x8xbf16, #tpu.memory_space<vmem>>, vector<1x1x8x8xbf16>
      %6 = vector.shape_cast %5 : vector<1x1x8x8xbf16> to vector<8x8xbf16>
      %c0_10 = arith.constant 0 : index
      %c0_11 = arith.constant 0 : index
      %7 = vector.load %arg2[%c0_10, %c0_11] : memref<8x4xbf16, #tpu.memory_space<vmem>>, vector<8x4xbf16>
      %cst_12 = arith.constant dense<0.000000e+00> : vector<8x4xf32>
      %8 = tpu.matmul %6, %7, %cst_12 {dimension_numbers = #tpu.dot_dimension_numbers<[1], [0], [0], [1], [0, 0, 1, 1], [], []>} : vector<8x8xbf16>, vector<8x4xbf16>, vector<8x4xf32> -> vector<8x4xf32>
      %c0_13 = arith.constant 0 : index
      %c0_14 = arith.constant 0 : index
      %9 = vector.load %arg3[%c0_13, %c0_14] : memref<1x4xf32, #tpu.memory_space<vmem>>, vector<1x4xf32>
      %10 = vector.broadcast %9 : vector<1x4xf32> to vector<8x4xf32>
      %11 = arith.addf %8, %10 : vector<8x4xf32>
      %cst_15 = arith.constant 1.000000e-01 : f32
      %12 = vector.broadcast %cst_15 : f32 to vector<8x4xf32>
      %13 = arith.mulf %12, %11 : vector<8x4xf32>
      %14 = arith.maximumf %11, %13 : vector<8x4xf32>
      %c1_i32_16 = arith.constant 1 : i32
      %15 = arith.addi %arg8, %c1_i32_16 : i32
      %16 = arith.index_cast %15 : i32 to index
      %c1 = arith.constant 1 : index
      %c0_17 = arith.constant 0 : index
      %17 = vector.load %arg7[%16, %c1, %c0_17] : memref<10x10x4xf32, #tpu.memory_space<vmem>>, vector<1x8x4xf32>
      %18 = vector.shape_cast %17 : vector<1x8x4xf32> to vector<8x4xf32>
      %19 = vector.shape_cast %14 : vector<8x4xf32> to vector<1x8x4xf32>
      tpu.vector_store %arg7[%16, %c1, %c0_17], %19 {strides = array<i32>} : memref<10x10x4xf32, #tpu.memory_space<vmem>>, vector<1x8x4xf32>,
    }
    %c8_i32_2 = arith.constant 8 : i32
    %c0_i32_3 = arith.constant 0 : i32
    %c8_i32_4 = arith.constant 8 : i32
    %3 = arith.addi %c0_i32_3, %c8_i32_4 : i32
    %c1_i32_5 = arith.constant 1 : i32
    scf.for %arg8 = %c0_i32_3 to %3 step %c1_i32_5  : i32 {
      %c0_7 = arith.constant 0 : index
      %c0_8 = arith.constant 0 : index
      %4 = vector.load %arg5[%c0_7, %c0_8] : memref<1x8xf32, #tpu.memory_space<vmem>>, vector<1x8xf32>
      %5 = vector.shape_cast %4 : vector<1x8xf32> to vector<1x8xf32>
      %6 = vector.broadcast %5 : vector<1x8xf32> to vector<8x8xf32>
      %c0_i32_9 = arith.constant 0 : i32
      %7 = arith.addi %arg8, %c0_i32_9 : i32
      %8 = arith.index_cast %7 : i32 to index
      %c0_10 = arith.constant 0 : index
      %c0_11 = arith.constant 0 : index
      %9 = vector.load %arg7[%8, %c0_10, %c0_11] : memref<10x10x4xf32, #tpu.memory_space<vmem>>, vector<1x8x4xf32>
      %10 = vector.shape_cast %9 : vector<1x8x4xf32> to vector<8x4xf32>
      %11 = arith.truncf %10 : vector<8x4xf32> to vector<8x4xbf16>
      %c0_12 = arith.constant 0 : index
      %c0_13 = arith.constant 0 : index
      %c0_14 = arith.constant 0 : index
      %12 = vector.load %arg4[%c0_12, %c0_13, %c0_14] : memref<9x4x8xbf16, #tpu.memory_space<vmem>>, vector<1x4x8xbf16>
      %13 = vector.shape_cast %12 : vector<1x4x8xbf16> to vector<4x8xbf16>
      %cst_15 = arith.constant dense<0.000000e+00> : vector<8x8xf32>
      %14 = tpu.matmul %11, %13, %cst_15 {dimension_numbers = #tpu.dot_dimension_numbers<[1], [0], [0], [1], [0, 0, 1, 1], [], []>} : vector<8x4xbf16>, vector<4x8xbf16>, vector<8x8xf32> -> vector<8x8xf32>
      %15 = arith.addf %6, %14 : vector<8x8xf32>
      %c0_i32_16 = arith.constant 0 : i32
      %16 = arith.addi %arg8, %c0_i32_16 : i32
      %17 = arith.index_cast %16 : i32 to index
      %c1 = arith.constant 1 : index
      %c0_17 = arith.constant 0 : index
      %18 = vector.load %arg7[%17, %c1, %c0_17] : memref<10x10x4xf32, #tpu.memory_space<vmem>>, vector<1x8x4xf32>
      %19 = vector.shape_cast %18 : vector<1x8x4xf32> to vector<8x4xf32>
      %20 = arith.truncf %19 : vector<8x4xf32> to vector<8x4xbf16>
      %c1_18 = arith.constant 1 : index
      %c0_19 = arith.constant 0 : index
      %c0_20 = arith.constant 0 : index
      %21 = vector.load %arg4[%c1_18, %c0_19, %c0_20] : memref<9x4x8xbf16, #tpu.memory_space<vmem>>, vector<1x4x8xbf16>
      %22 = vector.shape_cast %21 : vector<1x4x8xbf16> to vector<4x8xbf16>
      %cst_21 = arith.constant dense<0.000000e+00> : vector<8x8xf32>
      %23 = tpu.matmul %20, %22, %cst_21 {dimension_numbers = #tpu.dot_dimension_numbers<[1], [0], [0], [1], [0, 0, 1, 1], [], []>} : vector<8x4xbf16>, vector<4x8xbf16>, vector<8x8xf32> -> vector<8x8xf32>
      %24 = arith.addf %15, %23 : vector<8x8xf32>
      %c0_i32_22 = arith.constant 0 : i32
      %25 = arith.addi %arg8, %c0_i32_22 : i32
      %26 = arith.index_cast %25 : i32 to index
      %c2 = arith.constant 2 : index
      %c0_23 = arith.constant 0 : index
      %27 = vector.load %arg7[%26, %c2, %c0_23] : memref<10x10x4xf32, #tpu.memory_space<vmem>>, vector<1x8x4xf32>
      %28 = vector.shape_cast %27 : vector<1x8x4xf32> to vector<8x4xf32>
      %29 = arith.truncf %28 : vector<8x4xf32> to vector<8x4xbf16>
      %c2_24 = arith.constant 2 : index
      %c0_25 = arith.constant 0 : index
      %c0_26 = arith.constant 0 : index
      %30 = vector.load %arg4[%c2_24, %c0_25, %c0_26] : memref<9x4x8xbf16, #tpu.memory_space<vmem>>, vector<1x4x8xbf16>
      %31 = vector.shape_cast %30 : vector<1x4x8xbf16> to vector<4x8xbf16>
      %cst_27 = arith.constant dense<0.000000e+00> : vector<8x8xf32>
      %32 = tpu.matmul %29, %31, %cst_27 {dimension_numbers = #tpu.dot_dimension_numbers<[1], [0], [0], [1], [0, 0, 1, 1], [], []>} : vector<8x4xbf16>, vector<4x8xbf16>, vector<8x8xf32> -> vector<8x8xf32>
      %33 = arith.addf %24, %32 : vector<8x8xf32>
      %c1_i32_28 = arith.constant 1 : i32
      %34 = arith.addi %arg8, %c1_i32_28 : i32
      %35 = arith.index_cast %34 : i32 to index
      %c0_29 = arith.constant 0 : index
      %c0_30 = arith.constant 0 : index
      %36 = vector.load %arg7[%35, %c0_29, %c0_30] : memref<10x10x4xf32, #tpu.memory_space<vmem>>, vector<1x8x4xf32>
      %37 = vector.shape_cast %36 : vector<1x8x4xf32> to vector<8x4xf32>
      %38 = arith.truncf %37 : vector<8x4xf32> to vector<8x4xbf16>
      %c3 = arith.constant 3 : index
      %c0_31 = arith.constant 0 : index
      %c0_32 = arith.constant 0 : index
      %39 = vector.load %arg4[%c3, %c0_31, %c0_32] : memref<9x4x8xbf16, #tpu.memory_space<vmem>>, vector<1x4x8xbf16>
      %40 = vector.shape_cast %39 : vector<1x4x8xbf16> to vector<4x8xbf16>
      %cst_33 = arith.constant dense<0.000000e+00> : vector<8x8xf32>
      %41 = tpu.matmul %38, %40, %cst_33 {dimension_numbers = #tpu.dot_dimension_numbers<[1], [0], [0], [1], [0, 0, 1, 1], [], []>} : vector<8x4xbf16>, vector<4x8xbf16>, vector<8x8xf32> -> vector<8x8xf32>
      %42 = arith.addf %33, %41 : vector<8x8xf32>
      %c1_i32_34 = arith.constant 1 : i32
      %43 = arith.addi %arg8, %c1_i32_34 : i32
      %44 = arith.index_cast %43 : i32 to index
      %c1_35 = arith.constant 1 : index
      %c0_36 = arith.constant 0 : index
      %45 = vector.load %arg7[%44, %c1_35, %c0_36] : memref<10x10x4xf32, #tpu.memory_space<vmem>>, vector<1x8x4xf32>
      %46 = vector.shape_cast %45 : vector<1x8x4xf32> to vector<8x4xf32>
      %47 = arith.truncf %46 : vector<8x4xf32> to vector<8x4xbf16>
      %c4 = arith.constant 4 : index
      %c0_37 = arith.constant 0 : index
      %c0_38 = arith.constant 0 : index
      %48 = vector.load %arg4[%c4, %c0_37, %c0_38] : memref<9x4x8xbf16, #tpu.memory_space<vmem>>, vector<1x4x8xbf16>
      %49 = vector.shape_cast %48 : vector<1x4x8xbf16> to vector<4x8xbf16>
      %cst_39 = arith.constant dense<0.000000e+00> : vector<8x8xf32>
      %50 = tpu.matmul %47, %49, %cst_39 {dimension_numbers = #tpu.dot_dimension_numbers<[1], [0], [0], [1], [0, 0, 1, 1], [], []>} : vector<8x4xbf16>, vector<4x8xbf16>, vector<8x8xf32> -> vector<8x8xf32>
      %51 = arith.addf %42, %50 : vector<8x8xf32>
      %c1_i32_40 = arith.constant 1 : i32
      %52 = arith.addi %arg8, %c1_i32_40 : i32
      %53 = arith.index_cast %52 : i32 to index
      %c2_41 = arith.constant 2 : index
      %c0_42 = arith.constant 0 : index
      %54 = vector.load %arg7[%53, %c2_41, %c0_42] : memref<10x10x4xf32, #tpu.memory_space<vmem>>, vector<1x8x4xf32>
      %55 = vector.shape_cast %54 : vector<1x8x4xf32> to vector<8x4xf32>
      %56 = arith.truncf %55 : vector<8x4xf32> to vector<8x4xbf16>
      %c5 = arith.constant 5 : index
      %c0_43 = arith.constant 0 : index
      %c0_44 = arith.constant 0 : index
      %57 = vector.load %arg4[%c5, %c0_43, %c0_44] : memref<9x4x8xbf16, #tpu.memory_space<vmem>>, vector<1x4x8xbf16>
      %58 = vector.shape_cast %57 : vector<1x4x8xbf16> to vector<4x8xbf16>
      %cst_45 = arith.constant dense<0.000000e+00> : vector<8x8xf32>
      %59 = tpu.matmul %56, %58, %cst_45 {dimension_numbers = #tpu.dot_dimension_numbers<[1], [0], [0], [1], [0, 0, 1, 1], [], []>} : vector<8x4xbf16>, vector<4x8xbf16>, vector<8x8xf32> -> vector<8x8xf32>
      %60 = arith.addf %51, %59 : vector<8x8xf32>
      %c2_i32 = arith.constant 2 : i32
      %61 = arith.addi %arg8, %c2_i32 : i32
      %62 = arith.index_cast %61 : i32 to index
      %c0_46 = arith.constant 0 : index
      %c0_47 = arith.constant 0 : index
      %63 = vector.load %arg7[%62, %c0_46, %c0_47] : memref<10x10x4xf32, #tpu.memory_space<vmem>>, vector<1x8x4xf32>
      %64 = vector.shape_cast %63 : vector<1x8x4xf32> to vector<8x4xf32>
      %65 = arith.truncf %64 : vector<8x4xf32> to vector<8x4xbf16>
      %c6 = arith.constant 6 : index
      %c0_48 = arith.constant 0 : index
      %c0_49 = arith.constant 0 : index
      %66 = vector.load %arg4[%c6, %c0_48, %c0_49] : memref<9x4x8xbf16, #tpu.memory_space<vmem>>, vector<1x4x8xbf16>
      %67 = vector.shape_cast %66 : vector<1x4x8xbf16> to vector<4x8xbf16>
      %cst_50 = arith.constant dense<0.000000e+00> : vector<8x8xf32>
      %68 = tpu.matmul %65, %67, %cst_50 {dimension_numbers = #tpu.dot_dimension_numbers<[1], [0], [0], [1], [0, 0, 1, 1], [], []>} : vector<8x4xbf16>, vector<4x8xbf16>, vector<8x8xf32> -> vector<8x8xf32>
      %69 = arith.addf %60, %68 : vector<8x8xf32>
      %c2_i32_51 = arith.constant 2 : i32
      %70 = arith.addi %arg8, %c2_i32_51 : i32
      %71 = arith.index_cast %70 : i32 to index
      %c1_52 = arith.constant 1 : index
      %c0_53 = arith.constant 0 : index
      %72 = vector.load %arg7[%71, %c1_52, %c0_53] : memref<10x10x4xf32, #tpu.memory_space<vmem>>, vector<1x8x4xf32>
      %73 = vector.shape_cast %72 : vector<1x8x4xf32> to vector<8x4xf32>
      %74 = arith.truncf %73 : vector<8x4xf32> to vector<8x4xbf16>
      %c7 = arith.constant 7 : index
      %c0_54 = arith.constant 0 : index
      %c0_55 = arith.constant 0 : index
      %75 = vector.load %arg4[%c7, %c0_54, %c0_55] : memref<9x4x8xbf16, #tpu.memory_space<vmem>>, vector<1x4x8xbf16>
      %76 = vector.shape_cast %75 : vector<1x4x8xbf16> to vector<4x8xbf16>
      %cst_56 = arith.constant dense<0.000000e+00> : vector<8x8xf32>
      %77 = tpu.matmul %74, %76, %cst_56 {dimension_numbers = #tpu.dot_dimension_numbers<[1], [0], [0], [1], [0, 0, 1, 1], [], []>} : vector<8x4xbf16>, vector<4x8xbf16>, vector<8x8xf32> -> vector<8x8xf32>
      %78 = arith.addf %69, %77 : vector<8x8xf32>
      %c2_i32_57 = arith.constant 2 : i32
      %79 = arith.addi %arg8, %c2_i32_57 : i32
      %80 = arith.index_cast %79 : i32 to index
      %c2_58 = arith.constant 2 : index
      %c0_59 = arith.constant 0 : index
      %81 = vector.load %arg7[%80, %c2_58, %c0_59] : memref<10x10x4xf32, #tpu.memory_space<vmem>>, vector<1x8x4xf32>
      %82 = vector.shape_cast %81 : vector<1x8x4xf32> to vector<8x4xf32>
      %83 = arith.truncf %82 : vector<8x4xf32> to vector<8x4xbf16>
      %c8 = arith.constant 8 : index
      %c0_60 = arith.constant 0 : index
      %c0_61 = arith.constant 0 : index
      %84 = vector.load %arg4[%c8, %c0_60, %c0_61] : memref<9x4x8xbf16, #tpu.memory_space<vmem>>, vector<1x4x8xbf16>
      %85 = vector.shape_cast %84 : vector<1x4x8xbf16> to vector<4x8xbf16>
      %cst_62 = arith.constant dense<0.000000e+00> : vector<8x8xf32>
      %86 = tpu.matmul %83, %85, %cst_62 {dimension_numbers = #tpu.dot_dimension_numbers<[1], [0], [0], [1], [0, 0, 1, 1], [], []>} : vector<8x4xbf16>, vector<4x8xbf16>, vector<8x8xf32> -> vector<8x8xf32>
      %87 = arith.addf %78, %86 : vector<8x8xf32>
      %cst_63 = arith.constant 1.000000e-01 : f32
      %88 = vector.broadcast %cst_63 : f32 to vector<8x8xf32>
      %89 = arith.mulf %88, %87 : vector<8x8xf32>
      %90 = arith.maximumf %87, %89 : vector<8x8xf32>
      %c0_64 = arith.constant 0 : index
      %91 = arith.index_cast %arg8 : i32 to index
      %c0_65 = arith.constant 0 : index
      %c0_66 = arith.constant 0 : index
      %92 = vector.load %arg1[%c0_64, %91, %c0_65, %c0_66] : memref<1x8x8x8xbf16, #tpu.memory_space<vmem>>, vector<1x1x8x8xbf16>
      %93 = vector.shape_cast %92 : vector<1x1x8x8xbf16> to vector<8x8xbf16>
      %94 = arith.extf %93 : vector<8x8xbf16> to vector<8x8xf32>
      %95 = arith.addf %94, %90 : vector<8x8xf32>
      %96 = arith.truncf %95 : vector<8x8xf32> to vector<8x8xbf16>
      %c0_67 = arith.constant 0 : index
      %97 = arith.index_cast %arg8 : i32 to index
      %c0_68 = arith.constant 0 : index
      %c0_69 = arith.constant 0 : index
      %98 = vector.load %arg6[%c0_67, %97, %c0_68, %c0_69] : memref<1x8x8x8xbf16, #tpu.memory_space<vmem>>, vector<1x1x8x8xbf16>
      %99 = vector.shape_cast %98 : vector<1x1x8x8xbf16> to vector<8x8xbf16>
      %100 = vector.shape_cast %96 : vector<8x8xbf16> to vector<1x1x8x8xbf16>
      tpu.vector_store %arg6[%c0_67, %97, %c0_68, %c0_69], %100 {strides = array<i32>} : memref<1x8x8x8xbf16, #tpu.memory_space<vmem>>, vector<1x1x8x8xbf16>,
    }
    %c8_i32_6 = arith.constant 8 : i32
    return
  }
  func.func @transform_0(%arg0: i32) -> (i32, i32, i32, i32) {
    %c0_i32 = arith.constant 0 : i32
    %c0_i32_0 = arith.constant 0 : i32
    %c0_i32_1 = arith.constant 0 : i32
    %c0_i32_2 = arith.constant 0 : i32
    return %arg0, %c0_i32, %c0_i32_0, %c0_i32_1 : i32, i32, i32, i32
  }
  func.func @transform_1(%arg0: i32) -> (i32, i32) {
    %c0_i32 = arith.constant 0 : i32
    %c0_i32_0 = arith.constant 0 : i32
    %c0_i32_1 = arith.constant 0 : i32
    return %c0_i32, %c0_i32_0 : i32, i32
  }
  func.func @transform_2(%arg0: i32) -> (i32, i32) {
    %c0_i32 = arith.constant 0 : i32
    %c0_i32_0 = arith.constant 0 : i32
    %c0_i32_1 = arith.constant 0 : i32
    return %c0_i32, %c0_i32_0 : i32, i32
  }
  func.func @transform_3(%arg0: i32) -> (i32, i32, i32) {
    %c0_i32 = arith.constant 0 : i32
    %c0_i32_0 = arith.constant 0 : i32
    %c0_i32_1 = arith.constant 0 : i32
    %c0_i32_2 = arith.constant 0 : i32
    return %c0_i32, %c0_i32_0, %c0_i32_1 : i32, i32, i32
  }
  func.func @transform_4(%arg0: i32) -> (i32, i32) {
    %c0_i32 = arith.constant 0 : i32
    %c0_i32_0 = arith.constant 0 : i32
    %c0_i32_1 = arith.constant 0 : i32
    return %c0_i32, %c0_i32_0 : i32, i32
  }
  func.func @transform_5(%arg0: i32) -> (i32, i32, i32, i32) {
    %c0_i32 = arith.constant 0 : i32
    %c0_i32_0 = arith.constant 0 : i32
    %c0_i32_1 = arith.constant 0 : i32
    %c0_i32_2 = arith.constant 0 : i32
    return %arg0, %c0_i32, %c0_i32_0, %c0_i32_1 : i32, i32, i32, i32
  }
}

</mosaic_0001>

<llo_original>
// kernel: resblock_forward.3
$region0: #{resblock_forward.3}
  #allocation0 [shape = 'u32[]', space=smem, size = 0x4, offset = 0x4, fixed_abs, tag = 'smem constant byte address 0x4 - core index']
  #allocation1 [shape = 'u32[144,128]{1,0:T(1,128)}', space=vmem, size = 0x12000, scoped, tag = 'internal scratch']
  %s0 = inlined_call_operand.vmem [shape: bf16[2,18,8,4], index: 0, kind: input, shape index: {}]
  %s1 = inlined_call_operand.vmem [shape: bf16[2,18,8,4], index: 1, kind: input, shape index: {}]
  %s2 = inlined_call_operand.vmem [shape: bf16[2,18,8,4], index: 2, kind: input, shape index: {}]
  %s3 = inlined_call_operand.vmem [shape: bf16[9,4,8], index: 3, kind: input, shape index: {}]
  %s4 = inlined_call_operand.vmem [shape: f32[1,8], index: 4, kind: input, shape index: {}]
  %s5 = inlined_call_operand.vmem [shape: bf16[2,8,8,8], index: 5, kind: output, shape index: {}]
  %s6 = sld [smem:[#allocation0]]
  $region60: #{resblock_forward.3} parent=0
    _
  %s8 = ssub.s32 1, %s6
  %s9 = scalar_select 0, %s8, %s6
  loop: start=0, step=1, limit=4
  $region2: #{resblock_forward.3} parent=0 // loop_pre_header
    _
  $region3: #{resblock_forward.3} parent=0 // loop_header
    %s11 = sphi 0, %s15
    %p12 = scmp.ge.s32.totalorder %s11, 4
    %s21 = sphi 0, %s23
    %s24 = sphi 0, %s21
    %s25 = sphi 0, %s24
    %s41 = sphi 0, %s25
    %s47 = sphi 0, %s49
    %s50 = sphi 0, %s47
    %s51 = sphi 0, %s50
    %s67 = sphi 0, %s51
    %s73 = sphi 0, %s75
    %s76 = sphi 0, %s73
    %s77 = sphi 0, %s76
    %s93 = sphi 0, %s77
    %s97 = sphi 0, %s97
    %s99 = sphi 0, %s97
    %s100 = sphi 0, %s99
    %s114 = sphi 0, %s100
    %s118 = sphi 0, %s118
    %s120 = sphi 0, %s118
    %s121 = sphi 0, %s120
    %s135 = sphi 0, %s121
    %s141 = sphi 0, %s143
    %s144 = sphi 0, %s141
    %s145 = sphi 0, %s144
    %s161 = sphi 0, %s145
  $region4: #{resblock_forward.3} parent=0 // loop_header_branch
    %14 = sbr.rel (%p12) target = $region8
  $region5: #{resblock_forward.3} parent=0 // loop_body
    %s16 = ssub.s32 %s11, 1
    %s17 = ssub.s32 %s11, 2
    %s18 = sadd.s32 %s11, 1
    %s19 = ssub.s32 %s11, %s18
    %p20 = scmp.eq.s32.totalorder %s19, 0
    %s22 = sadd.s32 %s21, 1
    %s23 = scalar_select %p20, %s21, %s22
    %p26 = pneg %p20
    %p27 = scmp.eq.s32.totalorder %s11, 1
    %p28 = por %p26, %p27
    %p29 = scmp.ne.s32.totalorder %s21, %s24
    %p30 = scmp.eq.s32.totalorder %s11, 0
    %p31 = por %p29, %p30
    %p32 = scmp.ne.s32.totalorder %s21, %s24
    %p33 = scmp.eq.s32.totalorder %s16, 1
    %p34 = por %p32, %p33
    %p35 = scmp.ne.s32.totalorder %s24, %s25
    %p36 = scmp.eq.s32.totalorder %s16, 0
    %p37 = por %p35, %p36
    %p38 = scmp.ne.s32.totalorder %s24, %s25
    %p39 = scmp.eq.s32.totalorder %s17, 1
    %p40 = por %p38, %p39
    %p42 = scmp.ne.s32.totalorder %s25, %s41
    %p43 = scmp.eq.s32.totalorder %s17, 0
    %p44 = por %p42, %p43
    %s45 = ssub.s32 %s11, %s18
    %p46 = scmp.eq.s32.totalorder %s45, 0
    %s48 = sadd.s32 %s47, 1
    %s49 = scalar_select %p46, %s47, %s48
    %p52 = pneg %p46
    %p53 = scmp.eq.s32.totalorder %s11, 1
    %p54 = por %p52, %p53
    %p55 = scmp.ne.s32.totalorder %s47, %s50
    %p56 = scmp.eq.s32.totalorder %s11, 0
    %p57 = por %p55, %p56
    %p58 = scmp.ne.s32.totalorder %s47, %s50
    %p59 = scmp.eq.s32.totalorder %s16, 1
    %p60 = por %p58, %p59
    %p61 = scmp.ne.s32.totalorder %s50, %s51
    %p62 = scmp.eq.s32.totalorder %s16, 0
    %p63 = por %p61, %p62
    %p64 = scmp.ne.s32.totalorder %s50, %s51
    %p65 = scmp.eq.s32.totalorder %s17, 1
    %p66 = por %p64, %p65
    %p68 = scmp.ne.s32.totalorder %s51, %s67
    %p69 = scmp.eq.s32.totalorder %s17, 0
    %p70 = por %p68, %p69
    %s71 = ssub.s32 %s11, %s18
    %p72 = scmp.eq.s32.totalorder %s71, 0
    %s74 = sadd.s32 %s73, 1
    %s75 = scalar_select %p72, %s73, %s74
    %p78 = pneg %p72
    %p79 = scmp.eq.s32.totalorder %s11, 1
    %p80 = por %p78, %p79
    %p81 = scmp.ne.s32.totalorder %s73, %s76
    %p82 = scmp.eq.s32.totalorder %s11, 0
    %p83 = por %p81, %p82
    %p84 = scmp.ne.s32.totalorder %s73, %s76
    %p85 = scmp.eq.s32.totalorder %s16, 1
    %p86 = por %p84, %p85
    %p87 = scmp.ne.s32.totalorder %s76, %s77
    %p88 = scmp.eq.s32.totalorder %s16, 0
    %p89 = por %p87, %p88
    %p90 = scmp.ne.s32.totalorder %s76, %s77
    %p91 = scmp.eq.s32.totalorder %s17, 1
    %p92 = por %p90, %p91
    %p94 = scmp.ne.s32.totalorder %s77, %s93
    %p95 = scmp.eq.s32.totalorder %s17, 0
    %p96 = por %p94, %p95
    %s98 = sadd.s32 %s97, 1
    %p101 = scmp.eq.s32.totalorder %s11, 1
    %p102 = scmp.ne.s32.totalorder %s97, %s99
    %p103 = scmp.eq.s32.totalorder %s11, 0
    %p104 = por %p102, %p103
    %p105 = scmp.ne.s32.totalorder %s97, %s99
    %p106 = scmp.eq.s32.totalorder %s16, 1
    %p107 = por %p105, %p106
    %p108 = scmp.ne.s32.totalorder %s99, %s100
    %p109 = scmp.eq.s32.totalorder %s16, 0
    %p110 = por %p108, %p109
    %p111 = scmp.ne.s32.totalorder %s99, %s100
    %p112 = scmp.eq.s32.totalorder %s17, 1
    %p113 = por %p111, %p112
    %p115 = scmp.ne.s32.totalorder %s100, %s114
    %p116 = scmp.eq.s32.totalorder %s17, 0
    %p117 = por %p115, %p116
    %s119 = sadd.s32 %s118, 1
    %p122 = scmp.eq.s32.totalorder %s11, 1
    %p123 = scmp.ne.s32.totalorder %s118, %s120
    %p124 = scmp.eq.s32.totalorder %s11, 0
    %p125 = por %p123, %p124
    %p126 = scmp.ne.s32.totalorder %s118, %s120
    %p127 = scmp.eq.s32.totalorder %s16, 1
    %p128 = por %p126, %p127
    %p129 = scmp.ne.s32.totalorder %s120, %s121
    %p130 = scmp.eq.s32.totalorder %s16, 0
    %p131 = por %p129, %p130
    %p132 = scmp.ne.s32.totalorder %s120, %s121
    %p133 = scmp.eq.s32.totalorder %s17, 1
    %p134 = por %p132, %p133
    %p136 = scmp.ne.s32.totalorder %s121, %s135
    %p137 = scmp.eq.s32.totalorder %s17, 0
    %p138 = por %p136, %p137
    %s139 = ssub.s32 %s11, %s18
    %p140 = scmp.eq.s32.totalorder %s139, 0
    %s142 = sadd.s32 %s141, 1
    %s143 = scalar_select %p140, %s141, %s142
    %p146 = pneg %p140
    %p147 = scmp.eq.s32.totalorder %s11, 1
    %p148 = por %p146, %p147
    %p149 = scmp.ne.s32.totalorder %s141, %s144
    %p150 = scmp.eq.s32.totalorder %s11, 0
    %p151 = por %p149, %p150
    %p152 = scmp.ne.s32.totalorder %s141, %s144
    %p153 = scmp.eq.s32.totalorder %s16, 1
    %p154 = por %p152, %p153
    %p155 = scmp.ne.s32.totalorder %s144, %s145
    %p156 = scmp.eq.s32.totalorder %s16, 0
    %p157 = por %p155, %p156
    %p158 = scmp.ne.s32.totalorder %s144, %s145
    %p159 = scmp.eq.s32.totalorder %s17, 1
    %p160 = por %p158, %p159
    %p162 = scmp.ne.s32.totalorder %s145, %s161
    %p163 = scmp.eq.s32.totalorder %s17, 0
    %p164 = por %p162, %p163
    %p165 = scmp.le.s32.totalorder 1, %s11
    %p166 = scmp.lt.s32.totalorder %s11, 3
    %p167 = pnand %p165, %p166
    %p168 = pneg %p167
    // Predicated region
    $region9: #{resblock_forward.3} parent=5 // pred_check
      _
    $region10: #{resblock_forward.3} parent=5 // pred_check_branch
      %170 = sbr.rel (%p167) target = $region12
    $region11: #{resblock_forward.3} parent=5 // pred_region
      %s171 = ssub.s32 %s11, 1
      // Predicated region
      $region13: #{resblock_forward.3} parent=11 // pred_check
        %p172 = pneg %p110
      $region14: #{resblock_forward.3} parent=11 // pred_check_branch
        %174 = sbr.rel (%p172) target = $region16
      $region15: #{resblock_forward.3} parent=11 // pred_region
        _
      $region16: #{resblock_forward.3} parent=11 // pred_fallthru
        _
      // Predicated region
      $region17: #{resblock_forward.3} parent=11 // pred_check
        %p175 = pneg %p131
      $region18: #{resblock_forward.3} parent=11 // pred_check_branch
        %177 = sbr.rel (%p175) target = $region20
      $region19: #{resblock_forward.3} parent=11 // pred_region
        _
      $region20: #{resblock_forward.3} parent=11 // pred_fallthru
        _
    $region12: #{resblock_forward.3} parent=5 // pred_fallthru
      _
    %p178 = scmp.lt.s32.totalorder %s11, 2
    // Predicated region
    $region21: #{resblock_forward.3} parent=5 // pred_check
      %p179 = pneg %p178
    $region22: #{resblock_forward.3} parent=5 // pred_check_branch
      %181 = sbr.rel (%p179) target = $region24
    $region23: #{resblock_forward.3} parent=5 // pred_region
      // Predicated region
      $region25: #{resblock_forward.3} parent=23 // pred_check
        %p182 = pneg %p31
      $region26: #{resblock_forward.3} parent=23 // pred_check_branch
        %184 = sbr.rel (%p182) target = $region28
      $region27: #{resblock_forward.3} parent=23 // pred_region
        %p185 = scmp.lt.s32.totalorder %s11, 1
        %s186 = scalar_select %p185, %s11, 1
        %s187 = smul.addr %s186, 18
        %s188 = smul.addr %s187, 4
        %s189 = scalar_lea.vmem %s0, %s188
      $region28: #{resblock_forward.3} parent=23 // pred_fallthru
        _
      // Predicated region
      $region29: #{resblock_forward.3} parent=23 // pred_check
        %p190 = pneg %p57
      $region30: #{resblock_forward.3} parent=23 // pred_check_branch
        %192 = sbr.rel (%p190) target = $region32
      $region31: #{resblock_forward.3} parent=23 // pred_region
        %p193 = scmp.lt.s32.totalorder %s11, 1
        %s194 = scalar_select %p193, %s11, 1
        %s195 = smul.addr %s194, 18
        %s196 = smul.addr %s195, 4
        %s197 = scalar_lea.vmem %s1, %s196
      $region32: #{resblock_forward.3} parent=23 // pred_fallthru
        _
      // Predicated region
      $region33: #{resblock_forward.3} parent=23 // pred_check
        %p198 = pneg %p83
      $region34: #{resblock_forward.3} parent=23 // pred_check_branch
        %200 = sbr.rel (%p198) target = $region36
      $region35: #{resblock_forward.3} parent=23 // pred_region
        %p201 = scmp.lt.s32.totalorder %s11, 1
        %s202 = scalar_select %p201, %s11, 1
        %s203 = smul.addr %s202, 18
        %s204 = smul.addr %s203, 4
        %s205 = scalar_lea.vmem %s2, %s204
      $region36: #{resblock_forward.3} parent=23 // pred_fallthru
        _
    $region24: #{resblock_forward.3} parent=5 // pred_fallthru
      _
    %p206 = scmp.le.s32.totalorder 1, %s11
    %p207 = scmp.lt.s32.totalorder %s11, 3
    %p208 = pnand %p206, %p207
    %p209 = pneg %p208
    // Predicated region
    $region37: #{resblock_forward.3} parent=5 // pred_check
      _
    $region38: #{resblock_forward.3} parent=5 // pred_check_branch
      %211 = sbr.rel (%p208) target = $region40
    $region39: #{resblock_forward.3} parent=5 // pred_region
      %s212 = ssub.s32 %s11, 1
      %p213 = scmp.lt.s32.totalorder %s16, 1
      %s214 = scalar_select %p213, %s16, 1
      %s215 = smul.addr %s214, 18
      %s216 = smul.addr %s215, 4
      %s217 = scalar_lea.vmem %s0, %s216
      %p218 = pneg %p37
      %p219 = pneg %p34
      %p220 = scmp.lt.s32.totalorder %s16, 1
      %s221 = scalar_select %p220, %s16, 1
      %s222 = smul.addr %s221, 18
      %s223 = smul.addr %s222, 4
      %s224 = scalar_lea.vmem %s1, %s223
      %p225 = pneg %p63
      %p226 = pneg %p60
      %p227 = scmp.lt.s32.totalorder %s16, 1
      %s228 = scalar_select %p227, %s16, 1
      %s229 = smul.addr %s228, 18
      %s230 = smul.addr %s229, 4
      %s231 = scalar_lea.vmem %s2, %s230
      %p232 = pneg %p89
      %p233 = pneg %p86
      %p234 = pneg %p110
      %p235 = pneg %p107
      %p236 = pneg %p131
      %p237 = pneg %p128
      %p238 = pneg %p157
      %p239 = pneg %p154
      %p240 = scmp.lt.s32.totalorder %s16, 1
      %s241 = scalar_select %p240, %s16, 1
      %s242 = smul.addr %s241, 8
      %s243 = smul.addr %s242, 4
      %s244 = scalar_lea.vmem %s5, %s243
      %p245 = scmp.lt.s32.totalorder %s16, 1
      %s246 = scalar_select %p245, %s16, 1
      %s247 = smul.addr %s246, 18
      %s248 = smul.addr %s247, 4
      %s249 = scalar_lea.vmem %s0, %s248
      %p250 = scmp.lt.s32.totalorder %s16, 1
      %s251 = scalar_select %p250, %s16, 1
      %s252 = smul.addr %s251, 18
      %s253 = smul.addr %s252, 4
      %s254 = scalar_lea.vmem %s1, %s253
      %p255 = scmp.lt.s32.totalorder %s16, 1
      %s256 = scalar_select %p255, %s16, 1
      %s257 = smul.addr %s256, 18
      %s258 = smul.addr %s257, 4
      %s259 = scalar_lea.vmem %s2, %s258
      %p260 = scmp.lt.s32.totalorder %s16, 1
      %s261 = scalar_select %p260, %s16, 1
      %s262 = smul.addr %s261, 8
      %s263 = smul.addr %s262, 4
      %s264 = scalar_lea.vmem %s5, %s263
      loop: start=0, step=1, limit=8
      $region41: #{resblock_forward.3} parent=39 // loop_pre_header
        _
      $region42: #{resblock_forward.3} parent=39 // loop_header
        %s267 = sphi 0, %s271
        %p268 = scmp.ge.s32.totalorder %s267, 8
      $region43: #{resblock_forward.3} parent=39 // loop_header_branch
        %270 = sbr.rel (%p268) target = $region47
      $region44: #{resblock_forward.3} parent=39 // loop_body
        %v272 = vld [vmem:[%s4] sm:$0x1]
        %v274 = vlaneseq
        %v275 = vshrl.u32 %v274, 7
        %v276 = vsub.s32 0, %v275
        %v277 = vrot.slane %v272, %v276
        %s279 = smul.u32 %s267, 2
        %s280 = smul.addr %s279, 4
        %s281 = scalar_lea.vmem %s249, %s280
        %v282 = vld [vmem:[%s281] sm:$0xf]
        %v283 = vld [vmem:[%s3] sm:$0x3]
        %vm284 = vcmask 31744
        %v286 = vsel %vm284, %v282, 0
        %vm288 = vcmask 1041408
        %v290 = vsel %vm288, %v283, 0
        %292 = vmatprep.subr.bf16.mxu0 0
        %293 = vmatpush1.bf16.msra.mxu0 %v290
        %294 = vmatprep.subr.bf16.mxu0 0
        %295 = vmatpush1.bf16.msra.mxu0 0
        %296 = vmatprep.subr.bf16.mxu0 0
        %297 = vmatpush1.bf16.msra.mxu0 0
        %298 = vmatprep.subr.bf16.mxu0 0
        %299 = vmatpush1.bf16.msra.mxu0 0
        %300 = vmatprep.subr.bf16.mxu0 0
        %301 = vmatpush1.bf16.msra.mxu0 0
        %302 = vmatprep.subr.bf16.mxu0 0
        %303 = vmatpush1.bf16.msra.mxu0 0
        %304 = vmatprep.subr.bf16.mxu0 0
        %305 = vmatpush1.bf16.msra.mxu0 0
        %306 = vmatprep.subr.bf16.mxu0 0
        %307 = vmatpush1.bf16.msra.mxu0 0
        %308 = vmatprep.subr.bf16.mxu0 0
        %309 = vmatpush1.bf16.msra.mxu0 0
        %310 = vmatprep.subr.bf16.mxu0 0
        %311 = vmatpush1.bf16.msra.mxu0 0
        %312 = vmatprep.subr.bf16.mxu0 0
        %313 = vmatpush1.bf16.msra.mxu0 0
        %314 = vmatprep.subr.bf16.mxu0 0
        %315 = vmatpush1.bf16.msra.mxu0 0
        %316 = vmatprep.subr.bf16.mxu0 0
        %317 = vmatpush1.bf16.msra.mxu0 0
        %318 = vmatprep.subr.bf16.mxu0 0
        %319 = vmatpush1.bf16.msra.mxu0 0
        %320 = vmatprep.subr.bf16.mxu0 0
        %321 = vmatpush1.bf16.msra.mxu0 0
        %322 = vmatprep.subr.bf16.mxu0 0
        %323 = vmatpush1.bf16.msra.mxu0 0
        %324 = vmatprep.mubr.bf16.mxu0 0
        %325 = vmatmul.mubr.bf16.gmra.mrb[0].mxu0 %v286
        %v326 = vpop.f32.mrb[0].mxu0
        %v327 = vadd.f32 0.0, %v326
        %v328 = vpop.f32.mrb[0].mxu0
        %v329 = vpop.f32.mrb[0].mxu0
        %v330 = vpop.f32.mrb[0].mxu0
        %331 = vdwg.mxu0
        %v332 = vadd.f32 %v277, %v327
        %s333 = smul.addr %s279, 4
        %s334 = scalar_lea.vmem %s254, %s333
        %v335 = vld [vmem:[%s334] sm:$0xf]
        %s336 = scalar_lea.vmem %s3, 2
        %v337 = vld [vmem:[%s336] sm:$0x3]
        %v339 = vsel %vm284, %v335, 0
        %v342 = vsel %vm288, %v337, 0
        %344 = vmatprep.subr.bf16.mxu0 0
        %345 = vmatpush1.bf16.msra.mxu0 %v342
        %346 = vmatprep.subr.bf16.mxu0 0
        %347 = vmatpush1.bf16.msra.mxu0 0
        %348 = vmatprep.subr.bf16.mxu0 0
        %349 = vmatpush1.bf16.msra.mxu0 0
        %350 = vmatprep.subr.bf16.mxu0 0
        %351 = vmatpush1.bf16.msra.mxu0 0
        %352 = vmatprep.subr.bf16.mxu0 0
        %353 = vmatpush1.bf16.msra.mxu0 0
        %354 = vmatprep.subr.bf16.mxu0 0
        %355 = vmatpush1.bf16.msra.mxu0 0
        %356 = vmatprep.subr.bf16.mxu0 0
        %357 = vmatpush1.bf16.msra.mxu0 0
        %358 = vmatprep.subr.bf16.mxu0 0
        %359 = vmatpush1.bf16.msra.mxu0 0
        %360 = vmatprep.subr.bf16.mxu0 0
        %361 = vmatpush1.bf16.msra.mxu0 0
        %362 = vmatprep.subr.bf16.mxu0 0
        %363 = vmatpush1.bf16.msra.mxu0 0
        %364 = vmatprep.subr.bf16.mxu0 0
        %365 = vmatpush1.bf16.msra.mxu0 0
        %366 = vmatprep.subr.bf16.mxu0 0
        %367 = vmatpush1.bf16.msra.mxu0 0
        %368 = vmatprep.subr.bf16.mxu0 0
        %369 = vmatpush1.bf16.msra.mxu0 0
        %370 = vmatprep.subr.bf16.mxu0 0
        %371 = vmatpush1.bf16.msra.mxu0 0
        %372 = vmatprep.subr.bf16.mxu0 0
        %373 = vmatpush1.bf16.msra.mxu0 0
        %374 = vmatprep.subr.bf16.mxu0 0
        %375 = vmatpush1.bf16.msra.mxu0 0
        %376 = vmatprep.mubr.bf16.mxu0 0
        %377 = vmatmul.mubr.bf16.gmra.mrb[0].mxu0 %v339
        %v378 = vpop.f32.mrb[0].mxu0
        %v379 = vadd.f32 0.0, %v378
        %v380 = vpop.f32.mrb[0].mxu0
        %v381 = vpop.f32.mrb[0].mxu0
        %v382 = vpop.f32.mrb[0].mxu0
        %383 = vdwg.mxu0
        %v384 = vadd.f32 %v332, %v379
        %s385 = smul.addr %s279, 4
        %s386 = scalar_lea.vmem %s259, %s385
        %v387 = vld [vmem:[%s386] sm:$0xf]
        %s388 = scalar_lea.vmem %s3, 4
        %v389 = vld [vmem:[%s388] sm:$0x3]
        %v391 = vsel %vm284, %v387, 0
        %v394 = vsel %vm288, %v389, 0
        %396 = vmatprep.subr.bf16.mxu0 0
        %397 = vmatpush1.bf16.msra.mxu0 %v394
        %398 = vmatprep.subr.bf16.mxu0 0
        %399 = vmatpush1.bf16.msra.mxu0 0
        %400 = vmatprep.subr.bf16.mxu0 0
        %401 = vmatpush1.bf16.msra.mxu0 0
        %402 = vmatprep.subr.bf16.mxu0 0
        %403 = vmatpush1.bf16.msra.mxu0 0
        %404 = vmatprep.subr.bf16.mxu0 0
        %405 = vmatpush1.bf16.msra.mxu0 0
        %406 = vmatprep.subr.bf16.mxu0 0
        %407 = vmatpush1.bf16.msra.mxu0 0
        %408 = vmatprep.subr.bf16.mxu0 0
        %409 = vmatpush1.bf16.msra.mxu0 0
        %410 = vmatprep.subr.bf16.mxu0 0
        %411 = vmatpush1.bf16.msra.mxu0 0
        %412 = vmatprep.subr.bf16.mxu0 0
        %413 = vmatpush1.bf16.msra.mxu0 0
        %414 = vmatprep.subr.bf16.mxu0 0
        %415 = vmatpush1.bf16.msra.mxu0 0
        %416 = vmatprep.subr.bf16.mxu0 0
        %417 = vmatpush1.bf16.msra.mxu0 0
        %418 = vmatprep.subr.bf16.mxu0 0
        %419 = vmatpush1.bf16.msra.mxu0 0
        %420 = vmatprep.subr.bf16.mxu0 0
        %421 = vmatpush1.bf16.msra.mxu0 0
        %422 = vmatprep.subr.bf16.mxu0 0
        %423 = vmatpush1.bf16.msra.mxu0 0
        %424 = vmatprep.subr.bf16.mxu0 0
        %425 = vmatpush1.bf16.msra.mxu0 0
        %426 = vmatprep.subr.bf16.mxu0 0
        %427 = vmatpush1.bf16.msra.mxu0 0
        %428 = vmatprep.mubr.bf16.mxu0 0
        %429 = vmatmul.mubr.bf16.gmra.mrb[0].mxu0 %v391
        %v430 = vpop.f32.mrb[0].mxu0
        %v431 = vadd.f32 0.0, %v430
        %v432 = vpop.f32.mrb[0].mxu0
        %v433 = vpop.f32.mrb[0].mxu0
        %v434 = vpop.f32.mrb[0].mxu0
        %435 = vdwg.mxu0
        %v436 = vadd.f32 %v384, %v431
        %s437 = sadd.s32 %s279, 1
        %s438 = smul.addr %s437, 4
        %s439 = scalar_lea.vmem %s249, %s438
        %v440 = vld [vmem:[%s439] sm:$0xf]
        %s441 = scalar_lea.vmem %s3, 6
        %v442 = vld [vmem:[%s441] sm:$0x3]
        %v444 = vsel %vm284, %v440, 0
        %v447 = vsel %vm288, %v442, 0
        %449 = vmatprep.subr.bf16.mxu0 0
        %450 = vmatpush1.bf16.msra.mxu0 %v447
        %451 = vmatprep.subr.bf16.mxu0 0
        %452 = vmatpush1.bf16.msra.mxu0 0
        %453 = vmatprep.subr.bf16.mxu0 0
        %454 = vmatpush1.bf16.msra.mxu0 0
        %455 = vmatprep.subr.bf16.mxu0 0
        %456 = vmatpush1.bf16.msra.mxu0 0
        %457 = vmatprep.subr.bf16.mxu0 0
        %458 = vmatpush1.bf16.msra.mxu0 0
        %459 = vmatprep.subr.bf16.mxu0 0
        %460 = vmatpush1.bf16.msra.mxu0 0
        %461 = vmatprep.subr.bf16.mxu0 0
        %462 = vmatpush1.bf16.msra.mxu0 0
        %463 = vmatprep.subr.bf16.mxu0 0
        %464 = vmatpush1.bf16.msra.mxu0 0
        %465 = vmatprep.subr.bf16.mxu0 0
        %466 = vmatpush1.bf16.msra.mxu0 0
        %467 = vmatprep.subr.bf16.mxu0 0
        %468 = vmatpush1.bf16.msra.mxu0 0
        %469 = vmatprep.subr.bf16.mxu0 0
        %470 = vmatpush1.bf16.msra.mxu0 0
        %471 = vmatprep.subr.bf16.mxu0 0
        %472 = vmatpush1.bf16.msra.mxu0 0
        %473 = vmatprep.subr.bf16.mxu0 0
        %474 = vmatpush1.bf16.msra.mxu0 0
        %475 = vmatprep.subr.bf16.mxu0 0
        %476 = vmatpush1.bf16.msra.mxu0 0
        %477 = vmatprep.subr.bf16.mxu0 0
        %478 = vmatpush1.bf16.msra.mxu0 0
        %479 = vmatprep.subr.bf16.mxu0 0
        %480 = vmatpush1.bf16.msra.mxu0 0
        %481 = vmatprep.mubr.bf16.mxu0 0
        %482 = vmatmul.mubr.bf16.gmra.mrb[0].mxu0 %v444
        %v483 = vpop.f32.mrb[0].mxu0
        %v484 = vadd.f32 0.0, %v483
        %v485 = vpop.f32.mrb[0].mxu0
        %v486 = vpop.f32.mrb[0].mxu0
        %v487 = vpop.f32.mrb[0].mxu0
        %488 = vdwg.mxu0
        %v489 = vadd.f32 %v436, %v484
        %s490 = smul.addr %s437, 4
        %s491 = scalar_lea.vmem %s254, %s490
        %v492 = vld [vmem:[%s491] sm:$0xf]
        %s493 = scalar_lea.vmem %s3, 8
        %v494 = vld [vmem:[%s493] sm:$0x3]
        %v496 = vsel %vm284, %v492, 0
        %v499 = vsel %vm288, %v494, 0
        %501 = vmatprep.subr.bf16.mxu0 0
        %502 = vmatpush1.bf16.msra.mxu0 %v499
        %503 = vmatprep.subr.bf16.mxu0 0
        %504 = vmatpush1.bf16.msra.mxu0 0
        %505 = vmatprep.subr.bf16.mxu0 0
        %506 = vmatpush1.bf16.msra.mxu0 0
        %507 = vmatprep.subr.bf16.mxu0 0
        %508 = vmatpush1.bf16.msra.mxu0 0
        %509 = vmatprep.subr.bf16.mxu0 0
        %510 = vmatpush1.bf16.msra.mxu0 0
        %511 = vmatprep.subr.bf16.mxu0 0
        %512 = vmatpush1.bf16.msra.mxu0 0
        %513 = vmatprep.subr.bf16.mxu0 0
        %514 = vmatpush1.bf16.msra.mxu0 0
        %515 = vmatprep.subr.bf16.mxu0 0
        %516 = vmatpush1.bf16.msra.mxu0 0
        %517 = vmatprep.subr.bf16.mxu0 0
        %518 = vmatpush1.bf16.msra.mxu0 0
        %519 = vmatprep.subr.bf16.mxu0 0
        %520 = vmatpush1.bf16.msra.mxu0 0
        %521 = vmatprep.subr.bf16.mxu0 0
        %522 = vmatpush1.bf16.msra.mxu0 0
        %523 = vmatprep.subr.bf16.mxu0 0
        %524 = vmatpush1.bf16.msra.mxu0 0
        %525 = vmatprep.subr.bf16.mxu0 0
        %526 = vmatpush1.bf16.msra.mxu0 0
        %527 = vmatprep.subr.bf16.mxu0 0
        %528 = vmatpush1.bf16.msra.mxu0 0
        %529 = vmatprep.subr.bf16.mxu0 0
        %530 = vmatpush1.bf16.msra.mxu0 0
        %531 = vmatprep.subr.bf16.mxu0 0
        %532 = vmatpush1.bf16.msra.mxu0 0
        %533 = vmatprep.mubr.bf16.mxu0 0
        %534 = vmatmul.mubr.bf16.gmra.mrb[0].mxu0 %v496
        %v535 = vpop.f32.mrb[0].mxu0
        %v536 = vadd.f32 0.0, %v535
        %v537 = vpop.f32.mrb[0].mxu0
        %v538 = vpop.f32.mrb[0].mxu0
        %v539 = vpop.f32.mrb[0].mxu0
        %540 = vdwg.mxu0
        %v541 = vadd.f32 %v489, %v536
        %s542 = smul.addr %s437, 4
        %s543 = scalar_lea.vmem %s259, %s542
        %v544 = vld [vmem:[%s543] sm:$0xf]
        %s545 = scalar_lea.vmem %s3, 10
        %v546 = vld [vmem:[%s545] sm:$0x3]
        %v548 = vsel %vm284, %v544, 0
        %v551 = vsel %vm288, %v546, 0
        %553 = vmatprep.subr.bf16.mxu0 0
        %554 = vmatpush1.bf16.msra.mxu0 %v551
        %555 = vmatprep.subr.bf16.mxu0 0
        %556 = vmatpush1.bf16.msra.mxu0 0
        %557 = vmatprep.subr.bf16.mxu0 0
        %558 = vmatpush1.bf16.msra.mxu0 0
        %559 = vmatprep.subr.bf16.mxu0 0
        %560 = vmatpush1.bf16.msra.mxu0 0
        %561 = vmatprep.subr.bf16.mxu0 0
        %562 = vmatpush1.bf16.msra.mxu0 0
        %563 = vmatprep.subr.bf16.mxu0 0
        %564 = vmatpush1.bf16.msra.mxu0 0
        %565 = vmatprep.subr.bf16.mxu0 0
        %566 = vmatpush1.bf16.msra.mxu0 0
        %567 = vmatprep.subr.bf16.mxu0 0
        %568 = vmatpush1.bf16.msra.mxu0 0
        %569 = vmatprep.subr.bf16.mxu0 0
        %570 = vmatpush1.bf16.msra.mxu0 0
        %571 = vmatprep.subr.bf16.mxu0 0
        %572 = vmatpush1.bf16.msra.mxu0 0
        %573 = vmatprep.subr.bf16.mxu0 0
        %574 = vmatpush1.bf16.msra.mxu0 0
        %575 = vmatprep.subr.bf16.mxu0 0
        %576 = vmatpush1.bf16.msra.mxu0 0
        %577 = vmatprep.subr.bf16.mxu0 0
        %578 = vmatpush1.bf16.msra.mxu0 0
        %579 = vmatprep.subr.bf16.mxu0 0
        %580 = vmatpush1.bf16.msra.mxu0 0
        %581 = vmatprep.subr.bf16.mxu0 0
        %582 = vmatpush1.bf16.msra.mxu0 0
        %583 = vmatprep.subr.bf16.mxu0 0
        %584 = vmatpush1.bf16.msra.mxu0 0
        %585 = vmatprep.mubr.bf16.mxu0 0
        %586 = vmatmul.mubr.bf16.gmra.mrb[0].mxu0 %v548
        %v587 = vpop.f32.mrb[0].mxu0
        %v588 = vadd.f32 0.0, %v587
        %v589 = vpop.f32.mrb[0].mxu0
        %v590 = vpop.f32.mrb[0].mxu0
        %v591 = vpop.f32.mrb[0].mxu0
        %592 = vdwg.mxu0
        %v593 = vadd.f32 %v541, %v588
        %s594 = sadd.s32 %s279, 2
        %s595 = smul.addr %s594, 4
        %s596 = scalar_lea.vmem %s249, %s595
        %v597 = vld [vmem:[%s596] sm:$0xf]
        %s598 = scalar_lea.vmem %s3, 12
        %v599 = vld [vmem:[%s598] sm:$0x3]
        %v601 = vsel %vm284, %v597, 0
        %v604 = vsel %vm288, %v599, 0
        %606 = vmatprep.subr.bf16.mxu0 0
        %607 = vmatpush1.bf16.msra.mxu0 %v604
        %608 = vmatprep.subr.bf16.mxu0 0
        %609 = vmatpush1.bf16.msra.mxu0 0
        %610 = vmatprep.subr.bf16.mxu0 0
        %611 = vmatpush1.bf16.msra.mxu0 0
        %612 = vmatprep.subr.bf16.mxu0 0
        %613 = vmatpush1.bf16.msra.mxu0 0
        %614 = vmatprep.subr.bf16.mxu0 0
        %615 = vmatpush1.bf16.msra.mxu0 0
        %616 = vmatprep.subr.bf16.mxu0 0
        %617 = vmatpush1.bf16.msra.mxu0 0
        %618 = vmatprep.subr.bf16.mxu0 0
        %619 = vmatpush1.bf16.msra.mxu0 0
        %620 = vmatprep.subr.bf16.mxu0 0
        %621 = vmatpush1.bf16.msra.mxu0 0
        %622 = vmatprep.subr.bf16.mxu0 0
        %623 = vmatpush1.bf16.msra.mxu0 0
        %624 = vmatprep.subr.bf16.mxu0 0
        %625 = vmatpush1.bf16.msra.mxu0 0
        %626 = vmatprep.subr.bf16.mxu0 0
        %627 = vmatpush1.bf16.msra.mxu0 0
        %628 = vmatprep.subr.bf16.mxu0 0
        %629 = vmatpush1.bf16.msra.mxu0 0
        %630 = vmatprep.subr.bf16.mxu0 0
        %631 = vmatpush1.bf16.msra.mxu0 0
        %632 = vmatprep.subr.bf16.mxu0 0
        %633 = vmatpush1.bf16.msra.mxu0 0
        %634 = vmatprep.subr.bf16.mxu0 0
        %635 = vmatpush1.bf16.msra.mxu0 0
        %636 = vmatprep.subr.bf16.mxu0 0
        %637 = vmatpush1.bf16.msra.mxu0 0
        %638 = vmatprep.mubr.bf16.mxu0 0
        %639 = vmatmul.mubr.bf16.gmra.mrb[0].mxu0 %v601
        %v640 = vpop.f32.mrb[0].mxu0
        %v641 = vadd.f32 0.0, %v640
        %v642 = vpop.f32.mrb[0].mxu0
        %v643 = vpop.f32.mrb[0].mxu0
        %v644 = vpop.f32.mrb[0].mxu0
        %645 = vdwg.mxu0
        %v646 = vadd.f32 %v593, %v641
        %s647 = smul.addr %s594, 4
        %s648 = scalar_lea.vmem %s254, %s647
        %v649 = vld [vmem:[%s648] sm:$0xf]
        %s650 = scalar_lea.vmem %s3, 14
        %v651 = vld [vmem:[%s650] sm:$0x3]
        %v653 = vsel %vm284, %v649, 0
        %v656 = vsel %vm288, %v651, 0
        %658 = vmatprep.subr.bf16.mxu0 0
        %659 = vmatpush1.bf16.msra.mxu0 %v656
        %660 = vmatprep.subr.bf16.mxu0 0
        %661 = vmatpush1.bf16.msra.mxu0 0
        %662 = vmatprep.subr.bf16.mxu0 0
        %663 = vmatpush1.bf16.msra.mxu0 0
        %664 = vmatprep.subr.bf16.mxu0 0
        %665 = vmatpush1.bf16.msra.mxu0 0
        %666 = vmatprep.subr.bf16.mxu0 0
        %667 = vmatpush1.bf16.msra.mxu0 0
        %668 = vmatprep.subr.bf16.mxu0 0
        %669 = vmatpush1.bf16.msra.mxu0 0
        %670 = vmatprep.subr.bf16.mxu0 0
        %671 = vmatpush1.bf16.msra.mxu0 0
        %672 = vmatprep.subr.bf16.mxu0 0
        %673 = vmatpush1.bf16.msra.mxu0 0
        %674 = vmatprep.subr.bf16.mxu0 0
        %675 = vmatpush1.bf16.msra.mxu0 0
        %676 = vmatprep.subr.bf16.mxu0 0
        %677 = vmatpush1.bf16.msra.mxu0 0
        %678 = vmatprep.subr.bf16.mxu0 0
        %679 = vmatpush1.bf16.msra.mxu0 0
        %680 = vmatprep.subr.bf16.mxu0 0
        %681 = vmatpush1.bf16.msra.mxu0 0
        %682 = vmatprep.subr.bf16.mxu0 0
        %683 = vmatpush1.bf16.msra.mxu0 0
        %684 = vmatprep.subr.bf16.mxu0 0
        %685 = vmatpush1.bf16.msra.mxu0 0
        %686 = vmatprep.subr.bf16.mxu0 0
        %687 = vmatpush1.bf16.msra.mxu0 0
        %688 = vmatprep.subr.bf16.mxu0 0
        %689 = vmatpush1.bf16.msra.mxu0 0
        %690 = vmatprep.mubr.bf16.mxu0 0
        %691 = vmatmul.mubr.bf16.gmra.mrb[0].mxu0 %v653
        %v692 = vpop.f32.mrb[0].mxu0
        %v693 = vadd.f32 0.0, %v692
        %v694 = vpop.f32.mrb[0].mxu0
        %v695 = vpop.f32.mrb[0].mxu0
        %v696 = vpop.f32.mrb[0].mxu0
        %697 = vdwg.mxu0
        %v698 = vadd.f32 %v646, %v693
        %s699 = smul.addr %s594, 4
        %s700 = scalar_lea.vmem %s259, %s699
        %v701 = vld [vmem:[%s700] sm:$0xf]
        %s702 = scalar_lea.vmem %s3, 16
        %v703 = vld [vmem:[%s702] sm:$0x3]
        %v705 = vsel %vm284, %v701, 0
        %v708 = vsel %vm288, %v703, 0
        %710 = vmatprep.subr.bf16.mxu0 0
        %711 = vmatpush1.bf16.msra.mxu0 %v708
        %712 = vmatprep.subr.bf16.mxu0 0
        %713 = vmatpush1.bf16.msra.mxu0 0
        %714 = vmatprep.subr.bf16.mxu0 0
        %715 = vmatpush1.bf16.msra.mxu0 0
        %716 = vmatprep.subr.bf16.mxu0 0
        %717 = vmatpush1.bf16.msra.mxu0 0
        %718 = vmatprep.subr.bf16.mxu0 0
        %719 = vmatpush1.bf16.msra.mxu0 0
        %720 = vmatprep.subr.bf16.mxu0 0
        %721 = vmatpush1.bf16.msra.mxu0 0
        %722 = vmatprep.subr.bf16.mxu0 0
        %723 = vmatpush1.bf16.msra.mxu0 0
        %724 = vmatprep.subr.bf16.mxu0 0
        %725 = vmatpush1.bf16.msra.mxu0 0
        %726 = vmatprep.subr.bf16.mxu0 0
        %727 = vmatpush1.bf16.msra.mxu0 0
        %728 = vmatprep.subr.bf16.mxu0 0
        %729 = vmatpush1.bf16.msra.mxu0 0
        %730 = vmatprep.subr.bf16.mxu0 0
        %731 = vmatpush1.bf16.msra.mxu0 0
        %732 = vmatprep.subr.bf16.mxu0 0
        %733 = vmatpush1.bf16.msra.mxu0 0
        %734 = vmatprep.subr.bf16.mxu0 0
        %735 = vmatpush1.bf16.msra.mxu0 0
        %736 = vmatprep.subr.bf16.mxu0 0
        %737 = vmatpush1.bf16.msra.mxu0 0
        %738 = vmatprep.subr.bf16.mxu0 0
        %739 = vmatpush1.bf16.msra.mxu0 0
        %740 = vmatprep.subr.bf16.mxu0 0
        %741 = vmatpush1.bf16.msra.mxu0 0
        %742 = vmatprep.mubr.bf16.mxu0 0
        %743 = vmatmul.mubr.bf16.gmra.mrb[0].mxu0 %v705
        %v744 = vpop.f32.mrb[0].mxu0
        %v745 = vadd.f32 0.0, %v744
        %v746 = vpop.f32.mrb[0].mxu0
        %v747 = vpop.f32.mrb[0].mxu0
        %v748 = vpop.f32.mrb[0].mxu0
        %749 = vdwg.mxu0
        %v750 = vadd.f32 %v698, %v745
        %v751 = vmul.f32 %v750, 0.1
        %v752 = vmax.f32 %v750, %v751
        %v753 = vpack.c.bf16 %v752, %v752
        %s754 = smul.addr %s267, 4
        %s755 = scalar_lea.vmem %s264, %s754
        %vm756 = vcmask 60416
        %757 = vst.msk [vmem:[%s755] sm:$0xf] %vm756, %v753
      $region45: #{resblock_forward.3} parent=39 // loop_footer
        %s271 = sadd.s32 1, %s267
      $region46: #{resblock_forward.3} parent=39 // loop_footer_branch
        %266 = sbr.rel target = $region42
      $region47: #{resblock_forward.3} parent=39 // loop_exit
        _
      %p758 = scmp.lt.s32.totalorder %s16, 1
      %s759 = scalar_select %p758, %s16, 1
      %s760 = smul.addr %s759, 8
      %s761 = smul.addr %s760, 4
      %s762 = scalar_lea.vmem %s5, %s761
      // Predicated region
      $region48: #{resblock_forward.3} parent=39 // pred_check
        %p763 = pneg %p154
      $region49: #{resblock_forward.3} parent=39 // pred_check_branch
        %765 = sbr.rel (%p763) target = $region51
      $region50: #{resblock_forward.3} parent=39 // pred_region
        _
      $region51: #{resblock_forward.3} parent=39 // pred_fallthru
        _
    $region40: #{resblock_forward.3} parent=5 // pred_fallthru
      _
    %p766 = scmp.le.s32.totalorder 2, %s11
    // Predicated region
    $region52: #{resblock_forward.3} parent=5 // pred_check
      %p767 = pneg %p766
    $region53: #{resblock_forward.3} parent=5 // pred_check_branch
      %769 = sbr.rel (%p767) target = $region55
    $region54: #{resblock_forward.3} parent=5 // pred_region
      %s770 = ssub.s32 %s11, 2
      // Predicated region
      $region56: #{resblock_forward.3} parent=54 // pred_check
        %p771 = pneg %p160
      $region57: #{resblock_forward.3} parent=54 // pred_check_branch
        %773 = sbr.rel (%p771) target = $region59
      $region58: #{resblock_forward.3} parent=54 // pred_region
        %p774 = scmp.lt.s32.totalorder %s17, 1
        %s775 = scalar_select %p774, %s17, 1
        %s776 = smul.addr %s775, 8
        %s777 = smul.addr %s776, 4
        %s778 = scalar_lea.vmem %s5, %s777
      $region59: #{resblock_forward.3} parent=54 // pred_fallthru
        _
    $region55: #{resblock_forward.3} parent=5 // pred_fallthru
      _
  $region6: #{resblock_forward.3} parent=0 // loop_footer
    %s15 = sadd.s32 1, %s11
  $region7: #{resblock_forward.3} parent=0 // loop_footer_branch
    %10 = sbr.rel target = $region3
  $region8: #{resblock_forward.3} parent=0 // loop_exit
    _

// kernel: resblock_forward.4
$region0: #{resblock_forward.4}
  #allocation0 [shape = 'u32[]', space=smem, size = 0x4, offset = 0x4, fixed_abs, tag = 'smem constant byte address 0x4 - core index']
  #allocation1 [shape = 'u32[144,128]{1,0:T(1,128)}', space=vmem, size = 0x12000, scoped, tag = 'internal scratch']
  #allocation2 [shape = 'f32[10,10,4]{2,1,0:T(8,128)}', space=vmem, size = 0x14000, scoped, tag = 'scratch operand']
  %s0 = inlined_call_operand.vmem [shape: bf16[2,8,8,8], index: 0, kind: input, shape index: {}]
  %s1 = inlined_call_operand.vmem [shape: bf16[8,4], index: 1, kind: input, shape index: {}]
  %s2 = inlined_call_operand.vmem [shape: f32[1,4], index: 2, kind: input, shape index: {}]
  %s3 = inlined_call_operand.vmem [shape: bf16[9,4,8], index: 3, kind: input, shape index: {}]
  %s4 = inlined_call_operand.vmem [shape: f32[1,8], index: 4, kind: input, shape index: {}]
  %s5 = inlined_call_operand.vmem [shape: bf16[2,8,8,8], index: 5, kind: output, shape index: {}]
  %s6 = sld [smem:[#allocation0]]
  $region67: #{resblock_forward.4} parent=0
    _
  %s8 = ssub.s32 1, %s6
  %s9 = scalar_select 0, %s8, %s6
  loop: start=0, step=1, limit=4
  $region2: #{resblock_forward.4} parent=0 // loop_pre_header
    _
  $region3: #{resblock_forward.4} parent=0 // loop_header
    %s11 = sphi 0, %s15
    %p12 = scmp.ge.s32.totalorder %s11, 4
    %s21 = sphi 0, %s23
    %s24 = sphi 0, %s21
    %s25 = sphi 0, %s24
    %s41 = sphi 0, %s25
    %s45 = sphi 0, %s45
    %s47 = sphi 0, %s45
    %s48 = sphi 0, %s47
    %s62 = sphi 0, %s48
    %s66 = sphi 0, %s66
    %s68 = sphi 0, %s66
    %s69 = sphi 0, %s68
    %s83 = sphi 0, %s69
    %s87 = sphi 0, %s87
    %s89 = sphi 0, %s87
    %s90 = sphi 0, %s89
    %s104 = sphi 0, %s90
    %s108 = sphi 0, %s108
    %s110 = sphi 0, %s108
    %s111 = sphi 0, %s110
    %s125 = sphi 0, %s111
    %s131 = sphi 0, %s133
    %s134 = sphi 0, %s131
    %s135 = sphi 0, %s134
    %s151 = sphi 0, %s135
  $region4: #{resblock_forward.4} parent=0 // loop_header_branch
    %14 = sbr.rel (%p12) target = $region8
  $region5: #{resblock_forward.4} parent=0 // loop_body
    %s16 = ssub.s32 %s11, 1
    %s17 = ssub.s32 %s11, 2
    %s18 = sadd.s32 %s11, 1
    %s19 = ssub.s32 %s11, %s18
    %p20 = scmp.eq.s32.totalorder %s19, 0
    %s22 = sadd.s32 %s21, 1
    %s23 = scalar_select %p20, %s21, %s22
    %p26 = pneg %p20
    %p27 = scmp.eq.s32.totalorder %s11, 1
    %p28 = por %p26, %p27
    %p29 = scmp.ne.s32.totalorder %s21, %s24
    %p30 = scmp.eq.s32.totalorder %s11, 0
    %p31 = por %p29, %p30
    %p32 = scmp.ne.s32.totalorder %s21, %s24
    %p33 = scmp.eq.s32.totalorder %s16, 1
    %p34 = por %p32, %p33
    %p35 = scmp.ne.s32.totalorder %s24, %s25
    %p36 = scmp.eq.s32.totalorder %s16, 0
    %p37 = por %p35, %p36
    %p38 = scmp.ne.s32.totalorder %s24, %s25
    %p39 = scmp.eq.s32.totalorder %s17, 1
    %p40 = por %p38, %p39
    %p42 = scmp.ne.s32.totalorder %s25, %s41
    %p43 = scmp.eq.s32.totalorder %s17, 0
    %p44 = por %p42, %p43
    %s46 = sadd.s32 %s45, 1
    %p49 = scmp.eq.s32.totalorder %s11, 1
    %p50 = scmp.ne.s32.totalorder %s45, %s47
    %p51 = scmp.eq.s32.totalorder %s11, 0
    %p52 = por %p50, %p51
    %p53 = scmp.ne.s32.totalorder %s45, %s47
    %p54 = scmp.eq.s32.totalorder %s16, 1
    %p55 = por %p53, %p54
    %p56 = scmp.ne.s32.totalorder %s47, %s48
    %p57 = scmp.eq.s32.totalorder %s16, 0
    %p58 = por %p56, %p57
    %p59 = scmp.ne.s32.totalorder %s47, %s48
    %p60 = scmp.eq.s32.totalorder %s17, 1
    %p61 = por %p59, %p60
    %p63 = scmp.ne.s32.totalorder %s48, %s62
    %p64 = scmp.eq.s32.totalorder %s17, 0
    %p65 = por %p63, %p64
    %s67 = sadd.s32 %s66, 1
    %p70 = scmp.eq.s32.totalorder %s11, 1
    %p71 = scmp.ne.s32.totalorder %s66, %s68
    %p72 = scmp.eq.s32.totalorder %s11, 0
    %p73 = por %p71, %p72
    %p74 = scmp.ne.s32.totalorder %s66, %s68
    %p75 = scmp.eq.s32.totalorder %s16, 1
    %p76 = por %p74, %p75
    %p77 = scmp.ne.s32.totalorder %s68, %s69
    %p78 = scmp.eq.s32.totalorder %s16, 0
    %p79 = por %p77, %p78
    %p80 = scmp.ne.s32.totalorder %s68, %s69
    %p81 = scmp.eq.s32.totalorder %s17, 1
    %p82 = por %p80, %p81
    %p84 = scmp.ne.s32.totalorder %s69, %s83
    %p85 = scmp.eq.s32.totalorder %s17, 0
    %p86 = por %p84, %p85
    %s88 = sadd.s32 %s87, 1
    %p91 = scmp.eq.s32.totalorder %s11, 1
    %p92 = scmp.ne.s32.totalorder %s87, %s89
    %p93 = scmp.eq.s32.totalorder %s11, 0
    %p94 = por %p92, %p93
    %p95 = scmp.ne.s32.totalorder %s87, %s89
    %p96 = scmp.eq.s32.totalorder %s16, 1
    %p97 = por %p95, %p96
    %p98 = scmp.ne.s32.totalorder %s89, %s90
    %p99 = scmp.eq.s32.totalorder %s16, 0
    %p100 = por %p98, %p99
    %p101 = scmp.ne.s32.totalorder %s89, %s90
    %p102 = scmp.eq.s32.totalorder %s17, 1
    %p103 = por %p101, %p102
    %p105 = scmp.ne.s32.totalorder %s90, %s104
    %p106 = scmp.eq.s32.totalorder %s17, 0
    %p107 = por %p105, %p106
    %s109 = sadd.s32 %s108, 1
    %p112 = scmp.eq.s32.totalorder %s11, 1
    %p113 = scmp.ne.s32.totalorder %s108, %s110
    %p114 = scmp.eq.s32.totalorder %s11, 0
    %p115 = por %p113, %p114
    %p116 = scmp.ne.s32.totalorder %s108, %s110
    %p117 = scmp.eq.s32.totalorder %s16, 1
    %p118 = por %p116, %p117
    %p119 = scmp.ne.s32.totalorder %s110, %s111
    %p120 = scmp.eq.s32.totalorder %s16, 0
    %p121 = por %p119, %p120
    %p122 = scmp.ne.s32.totalorder %s110, %s111
    %p123 = scmp.eq.s32.totalorder %s17, 1
    %p124 = por %p122, %p123
    %p126 = scmp.ne.s32.totalorder %s111, %s125
    %p127 = scmp.eq.s32.totalorder %s17, 0
    %p128 = por %p126, %p127
    %s129 = ssub.s32 %s11, %s18
    %p130 = scmp.eq.s32.totalorder %s129, 0
    %s132 = sadd.s32 %s131, 1
    %s133 = scalar_select %p130, %s131, %s132
    %p136 = pneg %p130
    %p137 = scmp.eq.s32.totalorder %s11, 1
    %p138 = por %p136, %p137
    %p139 = scmp.ne.s32.totalorder %s131, %s134
    %p140 = scmp.eq.s32.totalorder %s11, 0
    %p141 = por %p139, %p140
    %p142 = scmp.ne.s32.totalorder %s131, %s134
    %p143 = scmp.eq.s32.totalorder %s16, 1
    %p144 = por %p142, %p143
    %p145 = scmp.ne.s32.totalorder %s134, %s135
    %p146 = scmp.eq.s32.totalorder %s16, 0
    %p147 = por %p145, %p146
    %p148 = scmp.ne.s32.totalorder %s134, %s135
    %p149 = scmp.eq.s32.totalorder %s17, 1
    %p150 = por %p148, %p149
    %p152 = scmp.ne.s32.totalorder %s135, %s151
    %p153 = scmp.eq.s32.totalorder %s17, 0
    %p154 = por %p152, %p153
    %p155 = scmp.le.s32.totalorder 1, %s11
    %p156 = scmp.lt.s32.totalorder %s11, 3
    %p157 = pnand %p155, %p156
    %p158 = pneg %p157
    // Predicated region
    $region9: #{resblock_forward.4} parent=5 // pred_check
      _
    $region10: #{resblock_forward.4} parent=5 // pred_check_branch
      %160 = sbr.rel (%p157) target = $region12
    $region11: #{resblock_forward.4} parent=5 // pred_region
      %s161 = ssub.s32 %s11, 1
      // Predicated region
      $region13: #{resblock_forward.4} parent=11 // pred_check
        %p162 = pneg %p58
      $region14: #{resblock_forward.4} parent=11 // pred_check_branch
        %164 = sbr.rel (%p162) target = $region16
      $region15: #{resblock_forward.4} parent=11 // pred_region
        _
      $region16: #{resblock_forward.4} parent=11 // pred_fallthru
        _
      // Predicated region
      $region17: #{resblock_forward.4} parent=11 // pred_check
        %p165 = pneg %p79
      $region18: #{resblock_forward.4} parent=11 // pred_check_branch
        %167 = sbr.rel (%p165) target = $region20
      $region19: #{resblock_forward.4} parent=11 // pred_region
        _
      $region20: #{resblock_forward.4} parent=11 // pred_fallthru
        _
      // Predicated region
      $region21: #{resblock_forward.4} parent=11 // pred_check
        %p168 = pneg %p100
      $region22: #{resblock_forward.4} parent=11 // pred_check_branch
        %170 = sbr.rel (%p168) target = $region24
      $region23: #{resblock_forward.4} parent=11 // pred_region
        _
      $region24: #{resblock_forward.4} parent=11 // pred_fallthru
        _
      // Predicated region
      $region25: #{resblock_forward.4} parent=11 // pred_check
        %p171 = pneg %p121
      $region26: #{resblock_forward.4} parent=11 // pred_check_branch
        %173 = sbr.rel (%p171) target = $region28
      $region27: #{resblock_forward.4} parent=11 // pred_region
        _
      $region28: #{resblock_forward.4} parent=11 // pred_fallthru
        _
    $region12: #{resblock_forward.4} parent=5 // pred_fallthru
      _
    %p174 = scmp.lt.s32.totalorder %s11, 2
    // Predicated region
    $region29: #{resblock_forward.4} parent=5 // pred_check
      %p175 = pneg %p174
    $region30: #{resblock_forward.4} parent=5 // pred_check_branch
      %177 = sbr.rel (%p175) target = $region32
    $region31: #{resblock_forward.4} parent=5 // pred_region
      // Predicated region
      $region33: #{resblock_forward.4} parent=31 // pred_check
        %p178 = pneg %p31
      $region34: #{resblock_forward.4} parent=31 // pred_check_branch
        %180 = sbr.rel (%p178) target = $region36
      $region35: #{resblock_forward.4} parent=31 // pred_region
        %p181 = scmp.lt.s32.totalorder %s11, 1
        %s182 = scalar_select %p181, %s11, 1
        %s183 = smul.addr %s182, 8
        %s184 = smul.addr %s183, 4
        %s185 = scalar_lea.vmem %s0, %s184
      $region36: #{resblock_forward.4} parent=31 // pred_fallthru
        _
    $region32: #{resblock_forward.4} parent=5 // pred_fallthru
      _
    %p186 = scmp.le.s32.totalorder 1, %s11
    %p187 = scmp.lt.s32.totalorder %s11, 3
    %p188 = pnand %p186, %p187
    %p189 = pneg %p188
    // Predicated region
    $region37: #{resblock_forward.4} parent=5 // pred_check
      _
    $region38: #{resblock_forward.4} parent=5 // pred_check_branch
      %191 = sbr.rel (%p188) target = $region40
    $region39: #{resblock_forward.4} parent=5 // pred_region
      %s192 = ssub.s32 %s11, 1
      %p193 = scmp.lt.s32.totalorder %s16, 1
      %s194 = scalar_select %p193, %s16, 1
      %s195 = smul.addr %s194, 8
      %s196 = smul.addr %s195, 4
      %s197 = scalar_lea.vmem %s0, %s196
      %p198 = pneg %p37
      %p199 = pneg %p34
      %p200 = pneg %p58
      %p201 = pneg %p55
      %p202 = pneg %p79
      %p203 = pneg %p76
      %p204 = pneg %p100
      %p205 = pneg %p97
      %p206 = pneg %p121
      %p207 = pneg %p118
      %p208 = pneg %p147
      %p209 = pneg %p144
      %p210 = scmp.lt.s32.totalorder %s16, 1
      %s211 = scalar_select %p210, %s16, 1
      %s212 = smul.addr %s211, 8
      %s213 = smul.addr %s212, 4
      %s214 = scalar_lea.vmem %s5, %s213
      %p215 = scmp.lt.s32.totalorder %s16, 1
      %s216 = scalar_select %p215, %s16, 1
      %s217 = smul.addr %s216, 8
      %s218 = smul.addr %s217, 4
      %s219 = scalar_lea.vmem %s0, %s218
      %p220 = scmp.lt.s32.totalorder %s16, 1
      %s221 = scalar_select %p220, %s16, 1
      %s222 = smul.addr %s221, 8
      %s223 = smul.addr %s222, 4
      %s224 = scalar_lea.vmem %s5, %s223
      %vm226 = vcmask 31744
      %227 = vst.msk [vmem:[#allocation2] sm:$0xff] %vm226, 0.0
      %vm228 = vcmask 25600
      %229 = vst.msk [vmem:[#allocation2 + $0x8] sm:$0x3] %vm228, 0.0
      %230 = vst.msk [vmem:[#allocation2 + $0x10] sm:$0xff] %vm226, 0.0
      %231 = vst.msk [vmem:[#allocation2 + $0x18] sm:$0x3] %vm228, 0.0
      %232 = vst.msk [vmem:[#allocation2 + $0x20] sm:$0xff] %vm226, 0.0
      %233 = vst.msk [vmem:[#allocation2 + $0x28] sm:$0x3] %vm228, 0.0
      %234 = vst.msk [vmem:[#allocation2 + $0x30] sm:$0xff] %vm226, 0.0
      %235 = vst.msk [vmem:[#allocation2 + $0x38] sm:$0x3] %vm228, 0.0
      %236 = vst.msk [vmem:[#allocation2 + $0x40] sm:$0xff] %vm226, 0.0
      %237 = vst.msk [vmem:[#allocation2 + $0x48] sm:$0x3] %vm228, 0.0
      %238 = vst.msk [vmem:[#allocation2 + $0x50] sm:$0xff] %vm226, 0.0
      %239 = vst.msk [vmem:[#allocation2 + $0x58] sm:$0x3] %vm228, 0.0
      %240 = vst.msk [vmem:[#allocation2 + $0x60] sm:$0xff] %vm226, 0.0
      %241 = vst.msk [vmem:[#allocation2 + $0x68] sm:$0x3] %vm228, 0.0
      %242 = vst.msk [vmem:[#allocation2 + $0x70] sm:$0xff] %vm226, 0.0
      %243 = vst.msk [vmem:[#allocation2 + $0x78] sm:$0x3] %vm228, 0.0
      %244 = vst.msk [vmem:[#allocation2 + $0x80] sm:$0xff] %vm226, 0.0
      %245 = vst.msk [vmem:[#allocation2 + $0x88] sm:$0x3] %vm228, 0.0
      %246 = vst.msk [vmem:[#allocation2 + $0x90] sm:$0xff] %vm226, 0.0
      %247 = vst.msk [vmem:[#allocation2 + $0x98] sm:$0x3] %vm228, 0.0
      loop: start=0, step=1, limit=8
      $region41: #{resblock_forward.4} parent=39 // loop_pre_header
        _
      $region42: #{resblock_forward.4} parent=39 // loop_header
        %s249 = sphi 0, %s253
        %p250 = scmp.ge.s32.totalorder %s249, 8
      $region43: #{resblock_forward.4} parent=39 // loop_header_branch
        %252 = sbr.rel (%p250) target = $region47
      $region44: #{resblock_forward.4} parent=39 // loop_body
        %s254 = smul.addr %s249, 4
        %s255 = scalar_lea.vmem %s219, %s254
        %v256 = vld [vmem:[%s255] sm:$0xf]
        %v257 = vld [vmem:[%s1] sm:$0xf]
        %v258 = vld [vmem:[%s2] sm:$0x1]
        %v260 = vlaneseq
        %v261 = vshrl.u32 %v260, 7
        %v262 = vsub.s32 0, %v261
        %v263 = vrot.slane %v258, %v262
        %vm265 = vcmask 64512
        %v267 = vsel %vm265, %v256, 0
        %vm269 = vcmask 1043456
        %v271 = vsel %vm269, %v257, 0
        %273 = vmatprep.subr.bf16.mxu0 0
        %274 = vmatpush1.bf16.msra.mxu0 %v271
        %275 = vmatprep.subr.bf16.mxu0 0
        %276 = vmatpush1.bf16.msra.mxu0 0
        %277 = vmatprep.subr.bf16.mxu0 0
        %278 = vmatpush1.bf16.msra.mxu0 0
        %279 = vmatprep.subr.bf16.mxu0 0
        %280 = vmatpush1.bf16.msra.mxu0 0
        %281 = vmatprep.subr.bf16.mxu0 0
        %282 = vmatpush1.bf16.msra.mxu0 0
        %283 = vmatprep.subr.bf16.mxu0 0
        %284 = vmatpush1.bf16.msra.mxu0 0
        %285 = vmatprep.subr.bf16.mxu0 0
        %286 = vmatpush1.bf16.msra.mxu0 0
        %287 = vmatprep.subr.bf16.mxu0 0
        %288 = vmatpush1.bf16.msra.mxu0 0
        %289 = vmatprep.subr.bf16.mxu0 0
        %290 = vmatpush1.bf16.msra.mxu0 0
        %291 = vmatprep.subr.bf16.mxu0 0
        %292 = vmatpush1.bf16.msra.mxu0 0
        %293 = vmatprep.subr.bf16.mxu0 0
        %294 = vmatpush1.bf16.msra.mxu0 0
        %295 = vmatprep.subr.bf16.mxu0 0
        %296 = vmatpush1.bf16.msra.mxu0 0
        %297 = vmatprep.subr.bf16.mxu0 0
        %298 = vmatpush1.bf16.msra.mxu0 0
        %299 = vmatprep.subr.bf16.mxu0 0
        %300 = vmatpush1.bf16.msra.mxu0 0
        %301 = vmatprep.subr.bf16.mxu0 0
        %302 = vmatpush1.bf16.msra.mxu0 0
        %303 = vmatprep.subr.bf16.mxu0 0
        %304 = vmatpush1.bf16.msra.mxu0 0
        %305 = vmatprep.mubr.bf16.mxu0 0
        %306 = vmatmul.mubr.bf16.gmra.mrb[0].mxu0 %v267
        %v307 = vpop.f32.mrb[0].mxu0
        %v308 = vadd.f32 %v263, %v307
        %v309 = vpop.f32.mrb[0].mxu0
        %v310 = vpop.f32.mrb[0].mxu0
        %v311 = vpop.f32.mrb[0].mxu0
        %312 = vdwg.mxu0
        %v313 = vmul.f32 %v308, 0.1
        %v314 = vmax.f32 %v308, %v313
        %s315 = sadd.s32 %s249, 1
        %s316 = smul.u32 %s315, 16
        %s317 = scalar_lea.vmem [#allocation2], %s316
        %318 = vst.msk [vmem:[%s317 + $0x1] sm:$0xff] %vm226, %v314
      $region45: #{resblock_forward.4} parent=39 // loop_footer
        %s253 = sadd.s32 1, %s249
      $region46: #{resblock_forward.4} parent=39 // loop_footer_branch
        %248 = sbr.rel target = $region42
      $region47: #{resblock_forward.4} parent=39 // loop_exit
        _
      loop: start=0, step=1, limit=8
      $region48: #{resblock_forward.4} parent=39 // loop_pre_header
        _
      $region49: #{resblock_forward.4} parent=39 // loop_header
        %s320 = sphi 0, %s324
        %p321 = scmp.ge.s32.totalorder %s320, 8
      $region50: #{resblock_forward.4} parent=39 // loop_header_branch
        %323 = sbr.rel (%p321) target = $region54
      $region51: #{resblock_forward.4} parent=39 // loop_body
        %v325 = vld [vmem:[%s4] sm:$0x1]
        %v327 = vlaneseq
        %v328 = vshrl.u32 %v327, 7
        %v329 = vsub.s32 0, %v328
        %v330 = vrot.slane %v325, %v329
        %s332 = smul.u32 %s320, 16
        %s333 = scalar_lea.vmem [#allocation2], %s332
        %v334 = vld [vmem:[%s333] sm:$0xff]
        %v335 = vpack.c.bf16 %v334, %v334
        %v336 = vld [vmem:[%s3] sm:$0x3]
        %v338 = vsel %vm226, %v335, 0
        %vm340 = vcmask 1041408
        %v342 = vsel %vm340, %v336, 0
        %344 = vmatprep.subr.bf16.mxu0 0
        %345 = vmatpush1.bf16.msra.mxu0 %v342
        %346 = vmatprep.subr.bf16.mxu0 0
        %347 = vmatpush1.bf16.msra.mxu0 0
        %348 = vmatprep.subr.bf16.mxu0 0
        %349 = vmatpush1.bf16.msra.mxu0 0
        %350 = vmatprep.subr.bf16.mxu0 0
        %351 = vmatpush1.bf16.msra.mxu0 0
        %352 = vmatprep.subr.bf16.mxu0 0
        %353 = vmatpush1.bf16.msra.mxu0 0
        %354 = vmatprep.subr.bf16.mxu0 0
        %355 = vmatpush1.bf16.msra.mxu0 0
        %356 = vmatprep.subr.bf16.mxu0 0
        %357 = vmatpush1.bf16.msra.mxu0 0
        %358 = vmatprep.subr.bf16.mxu0 0
        %359 = vmatpush1.bf16.msra.mxu0 0
        %360 = vmatprep.subr.bf16.mxu0 0
        %361 = vmatpush1.bf16.msra.mxu0 0
        %362 = vmatprep.subr.bf16.mxu0 0
        %363 = vmatpush1.bf16.msra.mxu0 0
        %364 = vmatprep.subr.bf16.mxu0 0
        %365 = vmatpush1.bf16.msra.mxu0 0
        %366 = vmatprep.subr.bf16.mxu0 0
        %367 = vmatpush1.bf16.msra.mxu0 0
        %368 = vmatprep.subr.bf16.mxu0 0
        %369 = vmatpush1.bf16.msra.mxu0 0
        %370 = vmatprep.subr.bf16.mxu0 0
        %371 = vmatpush1.bf16.msra.mxu0 0
        %372 = vmatprep.subr.bf16.mxu0 0
        %373 = vmatpush1.bf16.msra.mxu0 0
        %374 = vmatprep.subr.bf16.mxu0 0
        %375 = vmatpush1.bf16.msra.mxu0 0
        %376 = vmatprep.mubr.bf16.mxu0 0
        %377 = vmatmul.mubr.bf16.gmra.mrb[0].mxu0 %v338
        %v378 = vpop.f32.mrb[0].mxu0
        %v379 = vadd.f32 0.0, %v378
        %v380 = vpop.f32.mrb[0].mxu0
        %v381 = vpop.f32.mrb[0].mxu0
        %v382 = vpop.f32.mrb[0].mxu0
        %383 = vdwg.mxu0
        %v384 = vadd.f32 %v330, %v379
        %v385 = vld [vmem:[%s333 + $0x1] sm:$0xff]
        %v386 = vpack.c.bf16 %v385, %v385
        %s387 = scalar_lea.vmem %s3, 2
        %v388 = vld [vmem:[%s387] sm:$0x3]
        %v390 = vsel %vm226, %v386, 0
        %v393 = vsel %vm340, %v388, 0
        %395 = vmatprep.subr.bf16.mxu0 0
        %396 = vmatpush1.bf16.msra.mxu0 %v393
        %397 = vmatprep.subr.bf16.mxu0 0
        %398 = vmatpush1.bf16.msra.mxu0 0
        %399 = vmatprep.subr.bf16.mxu0 0
        %400 = vmatpush1.bf16.msra.mxu0 0
        %401 = vmatprep.subr.bf16.mxu0 0
        %402 = vmatpush1.bf16.msra.mxu0 0
        %403 = vmatprep.subr.bf16.mxu0 0
        %404 = vmatpush1.bf16.msra.mxu0 0
        %405 = vmatprep.subr.bf16.mxu0 0
        %406 = vmatpush1.bf16.msra.mxu0 0
        %407 = vmatprep.subr.bf16.mxu0 0
        %408 = vmatpush1.bf16.msra.mxu0 0
        %409 = vmatprep.subr.bf16.mxu0 0
        %410 = vmatpush1.bf16.msra.mxu0 0
        %411 = vmatprep.subr.bf16.mxu0 0
        %412 = vmatpush1.bf16.msra.mxu0 0
        %413 = vmatprep.subr.bf16.mxu0 0
        %414 = vmatpush1.bf16.msra.mxu0 0
        %415 = vmatprep.subr.bf16.mxu0 0
        %416 = vmatpush1.bf16.msra.mxu0 0
        %417 = vmatprep.subr.bf16.mxu0 0
        %418 = vmatpush1.bf16.msra.mxu0 0
        %419 = vmatprep.subr.bf16.mxu0 0
        %420 = vmatpush1.bf16.msra.mxu0 0
        %421 = vmatprep.subr.bf16.mxu0 0
        %422 = vmatpush1.bf16.msra.mxu0 0
        %423 = vmatprep.subr.bf16.mxu0 0
        %424 = vmatpush1.bf16.msra.mxu0 0
        %425 = vmatprep.subr.bf16.mxu0 0
        %426 = vmatpush1.bf16.msra.mxu0 0
        %427 = vmatprep.mubr.bf16.mxu0 0
        %428 = vmatmul.mubr.bf16.gmra.mrb[0].mxu0 %v390
        %v429 = vpop.f32.mrb[0].mxu0
        %v430 = vadd.f32 0.0, %v429
        %v431 = vpop.f32.mrb[0].mxu0
        %v432 = vpop.f32.mrb[0].mxu0
        %v433 = vpop.f32.mrb[0].mxu0
        %434 = vdwg.mxu0
        %v435 = vadd.f32 %v384, %v430
        %v436 = vld [vmem:[%s333 + $0x2] sm:$0xff]
        %v437 = vpack.c.bf16 %v436, %v436
        %s438 = scalar_lea.vmem %s3, 4
        %v439 = vld [vmem:[%s438] sm:$0x3]
        %v441 = vsel %vm226, %v437, 0
        %v444 = vsel %vm340, %v439, 0
        %446 = vmatprep.subr.bf16.mxu0 0
        %447 = vmatpush1.bf16.msra.mxu0 %v444
        %448 = vmatprep.subr.bf16.mxu0 0
        %449 = vmatpush1.bf16.msra.mxu0 0
        %450 = vmatprep.subr.bf16.mxu0 0
        %451 = vmatpush1.bf16.msra.mxu0 0
        %452 = vmatprep.subr.bf16.mxu0 0
        %453 = vmatpush1.bf16.msra.mxu0 0
        %454 = vmatprep.subr.bf16.mxu0 0
        %455 = vmatpush1.bf16.msra.mxu0 0
        %456 = vmatprep.subr.bf16.mxu0 0
        %457 = vmatpush1.bf16.msra.mxu0 0
        %458 = vmatprep.subr.bf16.mxu0 0
        %459 = vmatpush1.bf16.msra.mxu0 0
        %460 = vmatprep.subr.bf16.mxu0 0
        %461 = vmatpush1.bf16.msra.mxu0 0
        %462 = vmatprep.subr.bf16.mxu0 0
        %463 = vmatpush1.bf16.msra.mxu0 0
        %464 = vmatprep.subr.bf16.mxu0 0
        %465 = vmatpush1.bf16.msra.mxu0 0
        %466 = vmatprep.subr.bf16.mxu0 0
        %467 = vmatpush1.bf16.msra.mxu0 0
        %468 = vmatprep.subr.bf16.mxu0 0
        %469 = vmatpush1.bf16.msra.mxu0 0
        %470 = vmatprep.subr.bf16.mxu0 0
        %471 = vmatpush1.bf16.msra.mxu0 0
        %472 = vmatprep.subr.bf16.mxu0 0
        %473 = vmatpush1.bf16.msra.mxu0 0
        %474 = vmatprep.subr.bf16.mxu0 0
        %475 = vmatpush1.bf16.msra.mxu0 0
        %476 = vmatprep.subr.bf16.mxu0 0
        %477 = vmatpush1.bf16.msra.mxu0 0
        %478 = vmatprep.mubr.bf16.mxu0 0
        %479 = vmatmul.mubr.bf16.gmra.mrb[0].mxu0 %v441
        %v480 = vpop.f32.mrb[0].mxu0
        %v481 = vadd.f32 0.0, %v480
        %v482 = vpop.f32.mrb[0].mxu0
        %v483 = vpop.f32.mrb[0].mxu0
        %v484 = vpop.f32.mrb[0].mxu0
        %485 = vdwg.mxu0
        %v486 = vadd.f32 %v435, %v481
        %s487 = sadd.s32 %s320, 1
        %s488 = smul.u32 %s487, 16
        %s489 = scalar_lea.vmem [#allocation2], %s488
        %v490 = vld [vmem:[%s489] sm:$0xff]
        %v491 = vpack.c.bf16 %v490, %v490
        %s492 = scalar_lea.vmem %s3, 6
        %v493 = vld [vmem:[%s492] sm:$0x3]
        %v495 = vsel %vm226, %v491, 0
        %v498 = vsel %vm340, %v493, 0
        %500 = vmatprep.subr.bf16.mxu0 0
        %501 = vmatpush1.bf16.msra.mxu0 %v498
        %502 = vmatprep.subr.bf16.mxu0 0
        %503 = vmatpush1.bf16.msra.mxu0 0
        %504 = vmatprep.subr.bf16.mxu0 0
        %505 = vmatpush1.bf16.msra.mxu0 0
        %506 = vmatprep.subr.bf16.mxu0 0
        %507 = vmatpush1.bf16.msra.mxu0 0
        %508 = vmatprep.subr.bf16.mxu0 0
        %509 = vmatpush1.bf16.msra.mxu0 0
        %510 = vmatprep.subr.bf16.mxu0 0
        %511 = vmatpush1.bf16.msra.mxu0 0
        %512 = vmatprep.subr.bf16.mxu0 0
        %513 = vmatpush1.bf16.msra.mxu0 0
        %514 = vmatprep.subr.bf16.mxu0 0
        %515 = vmatpush1.bf16.msra.mxu0 0
        %516 = vmatprep.subr.bf16.mxu0 0
        %517 = vmatpush1.bf16.msra.mxu0 0
        %518 = vmatprep.subr.bf16.mxu0 0
        %519 = vmatpush1.bf16.msra.mxu0 0
        %520 = vmatprep.subr.bf16.mxu0 0
        %521 = vmatpush1.bf16.msra.mxu0 0
        %522 = vmatprep.subr.bf16.mxu0 0
        %523 = vmatpush1.bf16.msra.mxu0 0
        %524 = vmatprep.subr.bf16.mxu0 0
        %525 = vmatpush1.bf16.msra.mxu0 0
        %526 = vmatprep.subr.bf16.mxu0 0
        %527 = vmatpush1.bf16.msra.mxu0 0
        %528 = vmatprep.subr.bf16.mxu0 0
        %529 = vmatpush1.bf16.msra.mxu0 0
        %530 = vmatprep.subr.bf16.mxu0 0
        %531 = vmatpush1.bf16.msra.mxu0 0
        %532 = vmatprep.mubr.bf16.mxu0 0
        %533 = vmatmul.mubr.bf16.gmra.mrb[0].mxu0 %v495
        %v534 = vpop.f32.mrb[0].mxu0
        %v535 = vadd.f32 0.0, %v534
        %v536 = vpop.f32.mrb[0].mxu0
        %v537 = vpop.f32.mrb[0].mxu0
        %v538 = vpop.f32.mrb[0].mxu0
        %539 = vdwg.mxu0
        %v540 = vadd.f32 %v486, %v535
        %v541 = vld [vmem:[%s489 + $0x1] sm:$0xff]
        %v542 = vpack.c.bf16 %v541, %v541
        %s543 = scalar_lea.vmem %s3, 8
        %v544 = vld [vmem:[%s543] sm:$0x3]
        %v546 = vsel %vm226, %v542, 0
        %v549 = vsel %vm340, %v544, 0
        %551 = vmatprep.subr.bf16.mxu0 0
        %552 = vmatpush1.bf16.msra.mxu0 %v549
        %553 = vmatprep.subr.bf16.mxu0 0
        %554 = vmatpush1.bf16.msra.mxu0 0
        %555 = vmatprep.subr.bf16.mxu0 0
        %556 = vmatpush1.bf16.msra.mxu0 0
        %557 = vmatprep.subr.bf16.mxu0 0
        %558 = vmatpush1.bf16.msra.mxu0 0
        %559 = vmatprep.subr.bf16.mxu0 0
        %560 = vmatpush1.bf16.msra.mxu0 0
        %561 = vmatprep.subr.bf16.mxu0 0
        %562 = vmatpush1.bf16.msra.mxu0 0
        %563 = vmatprep.subr.bf16.mxu0 0
        %564 = vmatpush1.bf16.msra.mxu0 0
        %565 = vmatprep.subr.bf16.mxu0 0
        %566 = vmatpush1.bf16.msra.mxu0 0
        %567 = vmatprep.subr.bf16.mxu0 0
        %568 = vmatpush1.bf16.msra.mxu0 0
        %569 = vmatprep.subr.bf16.mxu0 0
        %570 = vmatpush1.bf16.msra.mxu0 0
        %571 = vmatprep.subr.bf16.mxu0 0
        %572 = vmatpush1.bf16.msra.mxu0 0
        %573 = vmatprep.subr.bf16.mxu0 0
        %574 = vmatpush1.bf16.msra.mxu0 0
        %575 = vmatprep.subr.bf16.mxu0 0
        %576 = vmatpush1.bf16.msra.mxu0 0
        %577 = vmatprep.subr.bf16.mxu0 0
        %578 = vmatpush1.bf16.msra.mxu0 0
        %579 = vmatprep.subr.bf16.mxu0 0
        %580 = vmatpush1.bf16.msra.mxu0 0
        %581 = vmatprep.subr.bf16.mxu0 0
        %582 = vmatpush1.bf16.msra.mxu0 0
        %583 = vmatprep.mubr.bf16.mxu0 0
        %584 = vmatmul.mubr.bf16.gmra.mrb[0].mxu0 %v546
        %v585 = vpop.f32.mrb[0].mxu0
        %v586 = vadd.f32 0.0, %v585
        %v587 = vpop.f32.mrb[0].mxu0
        %v588 = vpop.f32.mrb[0].mxu0
        %v589 = vpop.f32.mrb[0].mxu0
        %590 = vdwg.mxu0
        %v591 = vadd.f32 %v540, %v586
        %v592 = vld [vmem:[%s489 + $0x2] sm:$0xff]
        %v593 = vpack.c.bf16 %v592, %v592
        %s594 = scalar_lea.vmem %s3, 10
        %v595 = vld [vmem:[%s594] sm:$0x3]
        %v597 = vsel %vm226, %v593, 0
        %v600 = vsel %vm340, %v595, 0
        %602 = vmatprep.subr.bf16.mxu0 0
        %603 = vmatpush1.bf16.msra.mxu0 %v600
        %604 = vmatprep.subr.bf16.mxu0 0
        %605 = vmatpush1.bf16.msra.mxu0 0
        %606 = vmatprep.subr.bf16.mxu0 0
        %607 = vmatpush1.bf16.msra.mxu0 0
        %608 = vmatprep.subr.bf16.mxu0 0
        %609 = vmatpush1.bf16.msra.mxu0 0
        %610 = vmatprep.subr.bf16.mxu0 0
        %611 = vmatpush1.bf16.msra.mxu0 0
        %612 = vmatprep.subr.bf16.mxu0 0
        %613 = vmatpush1.bf16.msra.mxu0 0
        %614 = vmatprep.subr.bf16.mxu0 0
        %615 = vmatpush1.bf16.msra.mxu0 0
        %616 = vmatprep.subr.bf16.mxu0 0
        %617 = vmatpush1.bf16.msra.mxu0 0
        %618 = vmatprep.subr.bf16.mxu0 0
        %619 = vmatpush1.bf16.msra.mxu0 0
        %620 = vmatprep.subr.bf16.mxu0 0
        %621 = vmatpush1.bf16.msra.mxu0 0
        %622 = vmatprep.subr.bf16.mxu0 0
        %623 = vmatpush1.bf16.msra.mxu0 0
        %624 = vmatprep.subr.bf16.mxu0 0
        %625 = vmatpush1.bf16.msra.mxu0 0
        %626 = vmatprep.subr.bf16.mxu0 0
        %627 = vmatpush1.bf16.msra.mxu0 0
        %628 = vmatprep.subr.bf16.mxu0 0
        %629 = vmatpush1.bf16.msra.mxu0 0
        %630 = vmatprep.subr.bf16.mxu0 0
        %631 = vmatpush1.bf16.msra.mxu0 0
        %632 = vmatprep.subr.bf16.mxu0 0
        %633 = vmatpush1.bf16.msra.mxu0 0
        %634 = vmatprep.mubr.bf16.mxu0 0
        %635 = vmatmul.mubr.bf16.gmra.mrb[0].mxu0 %v597
        %v636 = vpop.f32.mrb[0].mxu0
        %v637 = vadd.f32 0.0, %v636
        %v638 = vpop.f32.mrb[0].mxu0
        %v639 = vpop.f32.mrb[0].mxu0
        %v640 = vpop.f32.mrb[0].mxu0
        %641 = vdwg.mxu0
        %v642 = vadd.f32 %v591, %v637
        %s643 = sadd.s32 %s320, 2
        %s644 = smul.u32 %s643, 16
        %s645 = scalar_lea.vmem [#allocation2], %s644
        %v646 = vld [vmem:[%s645] sm:$0xff]
        %v647 = vpack.c.bf16 %v646, %v646
        %s648 = scalar_lea.vmem %s3, 12
        %v649 = vld [vmem:[%s648] sm:$0x3]
        %v651 = vsel %vm226, %v647, 0
        %v654 = vsel %vm340, %v649, 0
        %656 = vmatprep.subr.bf16.mxu0 0
        %657 = vmatpush1.bf16.msra.mxu0 %v654
        %658 = vmatprep.subr.bf16.mxu0 0
        %659 = vmatpush1.bf16.msra.mxu0 0
        %660 = vmatprep.subr.bf16.mxu0 0
        %661 = vmatpush1.bf16.msra.mxu0 0
        %662 = vmatprep.subr.bf16.mxu0 0
        %663 = vmatpush1.bf16.msra.mxu0 0
        %664 = vmatprep.subr.bf16.mxu0 0
        %665 = vmatpush1.bf16.msra.mxu0 0
        %666 = vmatprep.subr.bf16.mxu0 0
        %667 = vmatpush1.bf16.msra.mxu0 0
        %668 = vmatprep.subr.bf16.mxu0 0
        %669 = vmatpush1.bf16.msra.mxu0 0
        %670 = vmatprep.subr.bf16.mxu0 0
        %671 = vmatpush1.bf16.msra.mxu0 0
        %672 = vmatprep.subr.bf16.mxu0 0
        %673 = vmatpush1.bf16.msra.mxu0 0
        %674 = vmatprep.subr.bf16.mxu0 0
        %675 = vmatpush1.bf16.msra.mxu0 0
        %676 = vmatprep.subr.bf16.mxu0 0
        %677 = vmatpush1.bf16.msra.mxu0 0
        %678 = vmatprep.subr.bf16.mxu0 0
        %679 = vmatpush1.bf16.msra.mxu0 0
        %680 = vmatprep.subr.bf16.mxu0 0
        %681 = vmatpush1.bf16.msra.mxu0 0
        %682 = vmatprep.subr.bf16.mxu0 0
        %683 = vmatpush1.bf16.msra.mxu0 0
        %684 = vmatprep.subr.bf16.mxu0 0
        %685 = vmatpush1.bf16.msra.mxu0 0
        %686 = vmatprep.subr.bf16.mxu0 0
        %687 = vmatpush1.bf16.msra.mxu0 0
        %688 = vmatprep.mubr.bf16.mxu0 0
        %689 = vmatmul.mubr.bf16.gmra.mrb[0].mxu0 %v651
        %v690 = vpop.f32.mrb[0].mxu0
        %v691 = vadd.f32 0.0, %v690
        %v692 = vpop.f32.mrb[0].mxu0
        %v693 = vpop.f32.mrb[0].mxu0
        %v694 = vpop.f32.mrb[0].mxu0
        %695 = vdwg.mxu0
        %v696 = vadd.f32 %v642, %v691
        %v697 = vld [vmem:[%s645 + $0x1] sm:$0xff]
        %v698 = vpack.c.bf16 %v697, %v697
        %s699 = scalar_lea.vmem %s3, 14
        %v700 = vld [vmem:[%s699] sm:$0x3]
        %v702 = vsel %vm226, %v698, 0
        %v705 = vsel %vm340, %v700, 0
        %707 = vmatprep.subr.bf16.mxu0 0
        %708 = vmatpush1.bf16.msra.mxu0 %v705
        %709 = vmatprep.subr.bf16.mxu0 0
        %710 = vmatpush1.bf16.msra.mxu0 0
        %711 = vmatprep.subr.bf16.mxu0 0
        %712 = vmatpush1.bf16.msra.mxu0 0
        %713 = vmatprep.subr.bf16.mxu0 0
        %714 = vmatpush1.bf16.msra.mxu0 0
        %715 = vmatprep.subr.bf16.mxu0 0
        %716 = vmatpush1.bf16.msra.mxu0 0
        %717 = vmatprep.subr.bf16.mxu0 0
        %718 = vmatpush1.bf16.msra.mxu0 0
        %719 = vmatprep.subr.bf16.mxu0 0
        %720 = vmatpush1.bf16.msra.mxu0 0
        %721 = vmatprep.subr.bf16.mxu0 0
        %722 = vmatpush1.bf16.msra.mxu0 0
        %723 = vmatprep.subr.bf16.mxu0 0
        %724 = vmatpush1.bf16.msra.mxu0 0
        %725 = vmatprep.subr.bf16.mxu0 0
        %726 = vmatpush1.bf16.msra.mxu0 0
        %727 = vmatprep.subr.bf16.mxu0 0
        %728 = vmatpush1.bf16.msra.mxu0 0
        %729 = vmatprep.subr.bf16.mxu0 0
        %730 = vmatpush1.bf16.msra.mxu0 0
        %731 = vmatprep.subr.bf16.mxu0 0
        %732 = vmatpush1.bf16.msra.mxu0 0
        %733 = vmatprep.subr.bf16.mxu0 0
        %734 = vmatpush1.bf16.msra.mxu0 0
        %735 = vmatprep.subr.bf16.mxu0 0
        %736 = vmatpush1.bf16.msra.mxu0 0
        %737 = vmatprep.subr.bf16.mxu0 0
        %738 = vmatpush1.bf16.msra.mxu0 0
        %739 = vmatprep.mubr.bf16.mxu0 0
        %740 = vmatmul.mubr.bf16.gmra.mrb[0].mxu0 %v702
        %v741 = vpop.f32.mrb[0].mxu0
        %v742 = vadd.f32 0.0, %v741
        %v743 = vpop.f32.mrb[0].mxu0
        %v744 = vpop.f32.mrb[0].mxu0
        %v745 = vpop.f32.mrb[0].mxu0
        %746 = vdwg.mxu0
        %v747 = vadd.f32 %v696, %v742
        %v748 = vld [vmem:[%s645 + $0x2] sm:$0xff]
        %v749 = vpack.c.bf16 %v748, %v748
        %s750 = scalar_lea.vmem %s3, 16
        %v751 = vld [vmem:[%s750] sm:$0x3]
        %v753 = vsel %vm226, %v749, 0
        %v756 = vsel %vm340, %v751, 0
        %758 = vmatprep.subr.bf16.mxu0 0
        %759 = vmatpush1.bf16.msra.mxu0 %v756
        %760 = vmatprep.subr.bf16.mxu0 0
        %761 = vmatpush1.bf16.msra.mxu0 0
        %762 = vmatprep.subr.bf16.mxu0 0
        %763 = vmatpush1.bf16.msra.mxu0 0
        %764 = vmatprep.subr.bf16.mxu0 0
        %765 = vmatpush1.bf16.msra.mxu0 0
        %766 = vmatprep.subr.bf16.mxu0 0
        %767 = vmatpush1.bf16.msra.mxu0 0
        %768 = vmatprep.subr.bf16.mxu0 0
        %769 = vmatpush1.bf16.msra.mxu0 0
        %770 = vmatprep.subr.bf16.mxu0 0
        %771 = vmatpush1.bf16.msra.mxu0 0
        %772 = vmatprep.subr.bf16.mxu0 0
        %773 = vmatpush1.bf16.msra.mxu0 0
        %774 = vmatprep.subr.bf16.mxu0 0
        %775 = vmatpush1.bf16.msra.mxu0 0
        %776 = vmatprep.subr.bf16.mxu0 0
        %777 = vmatpush1.bf16.msra.mxu0 0
        %778 = vmatprep.subr.bf16.mxu0 0
        %779 = vmatpush1.bf16.msra.mxu0 0
        %780 = vmatprep.subr.bf16.mxu0 0
        %781 = vmatpush1.bf16.msra.mxu0 0
        %782 = vmatprep.subr.bf16.mxu0 0
        %783 = vmatpush1.bf16.msra.mxu0 0
        %784 = vmatprep.subr.bf16.mxu0 0
        %785 = vmatpush1.bf16.msra.mxu0 0
        %786 = vmatprep.subr.bf16.mxu0 0
        %787 = vmatpush1.bf16.msra.mxu0 0
        %788 = vmatprep.subr.bf16.mxu0 0
        %789 = vmatpush1.bf16.msra.mxu0 0
        %790 = vmatprep.mubr.bf16.mxu0 0
        %791 = vmatmul.mubr.bf16.gmra.mrb[0].mxu0 %v753
        %v792 = vpop.f32.mrb[0].mxu0
        %v793 = vadd.f32 0.0, %v792
        %v794 = vpop.f32.mrb[0].mxu0
        %v795 = vpop.f32.mrb[0].mxu0
        %v796 = vpop.f32.mrb[0].mxu0
        %797 = vdwg.mxu0
        %v798 = vadd.f32 %v747, %v793
        %v799 = vmul.f32 %v798, 0.1
        %v800 = vmax.f32 %v798, %v799
        %s801 = smul.addr %s320, 4
        %s802 = scalar_lea.vmem %s219, %s801
        %v803 = vld [vmem:[%s802] sm:$0xf]
        %v804 = vunpack.c.l.bf16 %v803
        %v805 = vadd.f32 %v804, %v800
        %v806 = vpack.c.bf16 %v805, %v805
        %s807 = smul.addr %s320, 4
        %s808 = scalar_lea.vmem %s224, %s807
        %vm809 = vcmask 60416
        %810 = vst.msk [vmem:[%s808] sm:$0xf] %vm809, %v806
      $region52: #{resblock_forward.4} parent=39 // loop_footer
        %s324 = sadd.s32 1, %s320
      $region53: #{resblock_forward.4} parent=39 // loop_footer_branch
        %319 = sbr.rel target = $region49
      $region54: #{resblock_forward.4} parent=39 // loop_exit
        _
      %p811 = scmp.lt.s32.totalorder %s16, 1
      %s812 = scalar_select %p811, %s16, 1
      %s813 = smul.addr %s812, 8
      %s814 = smul.addr %s813, 4
      %s815 = scalar_lea.vmem %s5, %s814
      // Predicated region
      $region55: #{resblock_forward.4} parent=39 // pred_check
        %p816 = pneg %p144
      $region56: #{resblock_forward.4} parent=39 // pred_check_branch
        %818 = sbr.rel (%p816) target = $region58
      $region57: #{resblock_forward.4} parent=39 // pred_region
        _
      $region58: #{resblock_forward.4} parent=39 // pred_fallthru
        _
    $region40: #{resblock_forward.4} parent=5 // pred_fallthru
      _
    %p819 = scmp.le.s32.totalorder 2, %s11
    // Predicated region
    $region59: #{resblock_forward.4} parent=5 // pred_check
      %p820 = pneg %p819
    $region60: #{resblock_forward.4} parent=5 // pred_check_branch
      %822 = sbr.rel (%p820) target = $region62
    $region61: #{resblock_forward.4} parent=5 // pred_region
      %s823 = ssub.s32 %s11, 2
      // Predicated region
      $region63: #{resblock_forward.4} parent=61 // pred_check
        %p824 = pneg %p150
      $region64: #{resblock_forward.4} parent=61 // pred_check_branch
        %826 = sbr.rel (%p824) target = $region66
      $region65: #{resblock_forward.4} parent=61 // pred_region
        %p827 = scmp.lt.s32.totalorder %s17, 1
        %s828 = scalar_select %p827, %s17, 1
        %s829 = smul.addr %s828, 8
        %s830 = smul.addr %s829, 4
        %s831 = scalar_lea.vmem %s5, %s830
      $region66: #{resblock_forward.4} parent=61 // pred_fallthru
        _
    $region62: #{resblock_forward.4} parent=5 // pred_fallthru
      _
  $region6: #{resblock_forward.4} parent=0 // loop_footer
    %s15 = sadd.s32 1, %s11
  $region7: #{resblock_forward.4} parent=0 // loop_footer_branch
    %10 = sbr.rel target = $region3
  $region8: #{resblock_forward.4} parent=0 // loop_exit
    _

</llo_original>
